<compile_context>
chip_gen: v5e
topology: v5e:2x2
jax: 0.10.0
libtpu: 0.0.40
codegen_flags: <defaults>
</compile_context>

<pallas_src>
import functools

import numpy as np
import jax
import jax.numpy as jnp
from jax import lax
from jax.experimental import pallas as pl
from jax.experimental.pallas import tpu as pltpu

EPS = 1e-6


# --------------------------------------------------------------------------
# Kernels
# --------------------------------------------------------------------------
def proj_kernel(x_ref, nw_ref, w_ref, lb_ref, q_ref, v_ref, lam_ref, g_ref, *, D):
    """Fused token_norm (RMSNorm) + q/v/decay/gate projections on a row tile."""
    x = x_ref[...]                                            # (TM, D) f32
    ms = jnp.mean(x * x, axis=-1, keepdims=True)
    xn = x * lax.rsqrt(ms + EPS) * nw_ref[...]                # token_norm
    h = jnp.dot(xn.astype(jnp.bfloat16), w_ref[...],          # one wide (D,4D) matmul
                preferred_element_type=jnp.float32)           # (TM, 4D) f32 accum
    q = h[:, 0 * D:1 * D]
    v = h[:, 1 * D:2 * D]
    f = h[:, 2 * D:3 * D]
    g = h[:, 3 * D:4 * D]
    q_ref[...] = q * jax.nn.sigmoid(q)                        # silu (q_activation)
    v_ref[...] = v
    lb = lb_ref[...]                                          # (1, D) lower bound
    lam_ref[...] = lb + (1.0 - lb) * jax.nn.sigmoid(f)        # decay in (lb, 1), f32
    g_ref[...] = jax.nn.sigmoid(g)                            # output gate


def scan_kernel(q_ref, lam_ref, v_ref, o_ref, s_ref, *, H, E):
    """Chunked MetaLA recurrence for one (batch, seq-chunk) grid step.

    Recurrence (per head):  S_t = diag(lam_t) S_{t-1} + (1 - lam_t) v_t^T,
                            o_t = q_t S_t.
    Chunked form with A_t = prod_{r<=t} lam_t (within the chunk):
      o_t   = (q_t*A_t) S_0 + sum_{s<=t} [(q_t*A_t) . (k_s/A_s)] v_s
      S_end = diag(A_end) S_0 + sum_s diag(A_end/A_s) k_s v_s^T
    q/lam/v/o refs: (1, C, D) f32 blocks; s_ref: (H, E, E) f32 carried state.
    """
    @pl.when(pl.program_id(1) == 0)
    def _():
        s_ref[...] = jnp.zeros_like(s_ref)

    C = q_ref.shape[1]
    row = lax.broadcasted_iota(jnp.int32, (C, C), 0)
    col = lax.broadcasted_iota(jnp.int32, (C, C), 1)
    tri = (col <= row).astype(jnp.float32)                    # lower-tri incl. diag
    e_r = lax.broadcasted_iota(jnp.int32, (E, E), 0)
    e_c = lax.broadcasted_iota(jnp.int32, (E, E), 1)
    eye_mask = e_r == e_c

    q_all = q_ref[0]                                          # (C, D) single load
    v_all = v_ref[0]
    lam_all = lam_ref[0]

    o_parts = []
    for hh in range(H):                                       # static unroll over heads
        sl = slice(hh * E, (hh + 1) * E)
        q = q_all[:, sl]                                      # (C, E) f32
        v = v_all[:, sl]
        lam = lam_all[:, sl]
        # cumulative log-decay within the chunk, via triangular matmul (f32)
        b = jnp.dot(tri, jnp.log(lam), preferred_element_type=jnp.float32)  # (C, E)
        q_dec = q * jnp.exp(b)                                # q_t * A_t (<= |q|)
        k = 1.0 - lam                                         # implicit key
        # TODO(synk): for very long chunks with decay pinned at the lower bound,
        # k/A_s can overflow; add secondary sub-chunking if that regime matters.
        k_intra = k * jnp.exp(-b)                             # k_s / A_s
        b_last = b[C - 1:C, :]                                # (1, E)
        k_hat = k * jnp.exp(b_last - b)                       # k_s * A_end/A_s (<= k)
        s0 = s_ref[hh]                                        # (E, E) carried state

        scores = lax.dot_general(q_dec, k_intra, (((1,), (1,)), ((), ())),
                                 preferred_element_type=jnp.float32)        # (C, C)
        scores = scores * tri                                 # causal mask
        o = (jnp.dot(scores, v, preferred_element_type=jnp.float32)
             + jnp.dot(q_dec, s0, preferred_element_type=jnp.float32))      # (C, E)
        o_parts.append(o)

        # state update: S_end = diag(exp(b_last)) S_0 + K_hat^T V
        decay_diag = jnp.where(eye_mask,
                               jnp.broadcast_to(jnp.exp(b_last), (E, E)), 0.0)
        s_inter = lax.dot_general(k_hat, v, (((0,), (0,)), ((), ())),
                                  preferred_element_type=jnp.float32)       # (E, E)
        s_ref[hh] = (jnp.dot(decay_diag, s0, preferred_element_type=jnp.float32)
                     + s_inter)

    # single lane-dense store per chunk
    o_ref[0] = jnp.concatenate(o_parts, axis=-1) if H > 1 else o_parts[0]


def out_kernel(o_ref, g_ref, res_ref, wo_ref, y_ref):
    """SRMSNorm(output) * gate -> out projection (bf16 MXU) + residual."""
    o = o_ref[...]
    ms = jnp.mean(o * o, axis=-1, keepdims=True)
    o = o * lax.rsqrt(ms + EPS) * g_ref[...]
    y_ref[...] = (jnp.dot(o.astype(jnp.bfloat16), wo_ref[...],
                          preferred_element_type=jnp.float32)
                  + res_ref[...])


def glu_kernel(x_ref, nw_ref, w13_ref, w2_ref, y_ref, *, MID):
    """Fused channel_norm (RMSNorm) + GLU channel mixer + residual."""
    x = x_ref[...]
    ms = jnp.mean(x * x, axis=-1, keepdims=True)
    xn = (x * lax.rsqrt(ms + EPS) * nw_ref[...]).astype(jnp.bfloat16)
    ab = jnp.dot(xn, w13_ref[...], preferred_element_type=jnp.float32)  # (TM, 2*MID)
    a = ab[:, :MID]
    bpart = ab[:, MID:]
    a = a * jax.nn.sigmoid(a)                                  # silu
    y_ref[...] = (jnp.dot((a * bpart).astype(jnp.bfloat16), w2_ref[...],
                          preferred_element_type=jnp.float32)
                  + x)


# --------------------------------------------------------------------------
# Tiling helpers + pallas_call wrappers
# --------------------------------------------------------------------------
def _row_tile(T):
    # <=256 rows keeps the double-buffered (TM,D) tiles VMEM-safe on v7x too.
    for tm in (256, 128, 64, 32, 16, 8):
        if T % tm == 0:
            return tm
    return T


def _seq_chunk(N):
    for c in (128, 64, 32, 16, 8):
        if N % c == 0:
            return c
    return N


def metala_proj(x2d, norm_w, wqvfg, lb):
    T, D = x2d.shape
    TM = _row_tile(T)
    row = pl.BlockSpec((TM, D), lambda i: (i, 0))
    vec = pl.BlockSpec((1, D), lambda i: (0, 0))
    wsp = pl.BlockSpec(wqvfg.shape, lambda i: (0, 0))
    sds = jax.ShapeDtypeStruct((T, D), jnp.float32)
    return pl.pallas_call(
        functools.partial(proj_kernel, D=D),
        out_shape=(sds, sds, sds, sds),
        grid=(T // TM,),
        in_specs=[row, vec, wsp, vec],
        out_specs=(row, row, row, row),
        compiler_params=pltpu.CompilerParams(dimension_semantics=("parallel",)),
    )(x2d, norm_w, wqvfg, lb)


def metala_scan(q, lam, v, H, E):
    B, N, D = q.shape
    C = _seq_chunk(N)
    blk = pl.BlockSpec((1, C, D), lambda b, c: (b, c, 0))
    return pl.pallas_call(
        functools.partial(scan_kernel, H=H, E=E),
        out_shape=jax.ShapeDtypeStruct((B, N, D), jnp.float32),
        grid=(B, N // C),
        in_specs=[blk, blk, blk],
        out_specs=blk,
        scratch_shapes=[pltpu.VMEM((H, E, E), jnp.float32)],
        compiler_params=pltpu.CompilerParams(
            dimension_semantics=("parallel", "arbitrary")),
    )(q, lam, v)


def metala_out(o2d, g2d, res2d, wo):
    T, D = o2d.shape
    TM = _row_tile(T)
    row = pl.BlockSpec((TM, D), lambda i: (i, 0))
    wsp = pl.BlockSpec(wo.shape, lambda i: (0, 0))
    return pl.pallas_call(
        out_kernel,
        out_shape=jax.ShapeDtypeStruct((T, D), jnp.float32),
        grid=(T // TM,),
        in_specs=[row, row, row, wsp],
        out_specs=row,
        compiler_params=pltpu.CompilerParams(dimension_semantics=("parallel",)),
    )(o2d, g2d, res2d, wo)


def glu(x2d, norm_w, w13, w2):
    T, D = x2d.shape
    MID = w2.shape[0]
    TM = _row_tile(T)
    row = pl.BlockSpec((TM, D), lambda i: (i, 0))
    vec = pl.BlockSpec((1, D), lambda i: (0, 0))
    return pl.pallas_call(
        functools.partial(glu_kernel, MID=MID),
        out_shape=jax.ShapeDtypeStruct((T, D), jnp.float32),
        grid=(T // TM,),
        in_specs=[row, vec,
                  pl.BlockSpec(w13.shape, lambda i: (0, 0)),
                  pl.BlockSpec(w2.shape, lambda i: (0, 0))],
        out_specs=row,
        compiler_params=pltpu.CompilerParams(dimension_semantics=("parallel",)),
    )(x2d, norm_w, w13, w2)


# --------------------------------------------------------------------------
# MetaLaLayer forward (glue in plain JAX; only free reshapes, no transposes)
# --------------------------------------------------------------------------
@functools.partial(jax.jit, static_argnums=(3,))
def metala_layer_forward(x, params, lower_bound, head_dim):
    B, N, D = x.shape
    E = head_dim
    H = D // E
    T = B * N

    x2d = x.reshape(T, D)
    # ---- token mixer: token_norm + q/v/decay/gate projections (fused) ----
    q, v, lam, g = metala_proj(x2d, params["token_norm_w"], params["wqvfg"],
                               lower_bound)
    # ---- chunked decay-gated linear-attention scan ----
    o = metala_scan(q.reshape(B, N, D), lam.reshape(B, N, D),
                    v.reshape(B, N, D), H, E)
    # ---- output norm + gate + out projection + residual (fused) ----
    x1 = metala_out(o.reshape(T, D), g, x2d, params["wo"])
    # ---- channel_norm + GLU + residual (fused) ----
    y = glu(x1, params["channel_norm_w"], params["w13"], params["w2"])
    return y.reshape(B, N, D)


# --------------------------------------------------------------------------
# Pure-JAX f32 reference (token-by-token scan) for a sanity check
# --------------------------------------------------------------------------
def _rms(x, w):
    return x * lax.rsqrt(jnp.mean(x * x, axis=-1, keepdims=True) + EPS) * w


def reference_forward(x, p, lb, E):
    B, N, D = x.shape
    H = D // E
    residual = x
    xn = _rms(x, p["token_norm_w"])
    q = jax.nn.silu(xn @ p["wq"])
    v = xn @ p["wv"]
    lam = lb + (1.0 - lb) * jax.nn.sigmoid(xn @ p["wf"])
    g = jax.nn.sigmoid(xn @ p["wg"])
    qh = q.reshape(B, N, H, E).transpose(1, 0, 2, 3)
    vh = v.reshape(B, N, H, E).transpose(1, 0, 2, 3)
    lh = lam.reshape(B, N, H, E).transpose(1, 0, 2, 3)

    def step(S, inp):
        q_t, lam_t, v_t = inp
        S = lam_t[..., :, None] * S + (1.0 - lam_t)[..., :, None] * v_t[..., None, :]
        return S, jnp.einsum("bhe,bhef->bhf", q_t, S)

    S0 = jnp.zeros((B, H, E, E), jnp.float32)
    _, outs = lax.scan(step, S0, (qh, lh, vh))
    o = outs.transpose(1, 0, 2, 3).reshape(B, N, D)
    o = o * lax.rsqrt(jnp.mean(o * o, axis=-1, keepdims=True) + EPS)
    o = o * g
    x = o @ p["wo"] + residual
    xc = _rms(x, p["channel_norm_w"])
    h = jax.nn.silu(xc @ p["w1"]) * (xc @ p["w3"])
    return h @ p["w2"] + x


# --------------------------------------------------------------------------
if __name__ == "__main__":
    B, N, D = 2, 8, 32          # batch, seq, embed_dim
    E = 16                      # expand_ratio (head dim) -> num_heads = 2
    MID = 64                    # GLU mid_dim
    INIT_STD = 0.02

    key = jax.random.PRNGKey(0)
    ks = jax.random.split(key, 10)

    def w(k, shape):
        return (INIT_STD * jax.random.normal(k, shape)).astype(jnp.float32)

    wq, wv = w(ks[0], (D, D)), w(ks[1], (D, D))
    wf, wg = w(ks[2], (D, D)), w(ks[3], (D, D))
    wo = w(ks[4], (D, D))
    w1, w3, w2 = w(ks[5], (D, MID)), w(ks[6], (D, MID)), w(ks[7], (MID, D))

    ref_params = {
        "token_norm_w": jnp.ones((1, D), jnp.float32),
        "channel_norm_w": jnp.ones((1, D), jnp.float32),
        "wq": wq, "wv": wv, "wf": wf, "wg": wg, "wo": wo,
        "w1": w1, "w3": w3, "w2": w2,
    }
    # kernel-side params: fused projection weights, bf16 matmul operands
    params = {
        "token_norm_w": ref_params["token_norm_w"],
        "channel_norm_w": ref_params["channel_norm_w"],
        "wqvfg": jnp.concatenate([wq, wv, wf, wg], axis=1).astype(jnp.bfloat16),
        "wo": wo.astype(jnp.bfloat16),
        "w13": jnp.concatenate([w1, w3], axis=1).astype(jnp.bfloat16),
        "w2": w2.astype(jnp.bfloat16),
    }

    x = jax.random.normal(ks[8], (B, N, D), dtype=jnp.float32)
    # per-layer decay lower bound (layer receives it, like HGRN/MetaLA)
    lower_bound = jnp.full((1, D), 0.1, jnp.float32)

    y = metala_layer_forward(x, params, lower_bound, E)
    y = jax.block_until_ready(y)

    y_ref = reference_forward(x, ref_params, lower_bound, E)
    assert np.all(np.isfinite(np.asarray(y)))
    assert np.allclose(np.asarray(y), np.asarray(y_ref), atol=2e-2, rtol=2e-2), (
        "mismatch vs pure-JAX reference: max abs diff "
        f"{np.max(np.abs(np.asarray(y) - np.asarray(y_ref)))}")

    print("KERNEL_OK")
</pallas_src>

<mosaic_0001>
module attributes {stable_mosaic.version = 11 : i64} {
  func.func @proj_kernel(%arg0: i32, %arg1: memref<16x32xf32, #tpu.memory_space<vmem>>, %arg2: memref<1x32xf32, #tpu.memory_space<vmem>>, %arg3: memref<32x128xbf16, #tpu.memory_space<vmem>>, %arg4: memref<1x32xf32, #tpu.memory_space<vmem>>, %arg5: memref<16x32xf32, #tpu.memory_space<vmem>>, %arg6: memref<16x32xf32, #tpu.memory_space<vmem>>, %arg7: memref<16x32xf32, #tpu.memory_space<vmem>>, %arg8: memref<16x32xf32, #tpu.memory_space<vmem>>) attributes {dimension_semantics = [#tpu.dimension_semantics<parallel>], iteration_bounds = array<i64: 1>, scalar_prefetch = 0 : i64, scratch_operands = 0 : i64, tpu.core_type = #tpu.core_type<tc>, window_params = [{transform_indices = @transform_0, window_bounds = array<i64: 16, 32>}, {pipeline_mode = #tpu.pipeline_mode<synchronous>, transform_indices = @transform_1, window_bounds = array<i64: 1, 32>}, {pipeline_mode = #tpu.pipeline_mode<synchronous>, transform_indices = @transform_2, window_bounds = array<i64: 32, 128>}, {pipeline_mode = #tpu.pipeline_mode<synchronous>, transform_indices = @transform_3, window_bounds = array<i64: 1, 32>}, {transform_indices = @transform_4, window_bounds = array<i64: 16, 32>}, {transform_indices = @transform_5, window_bounds = array<i64: 16, 32>}, {transform_indices = @transform_6, window_bounds = array<i64: 16, 32>}, {transform_indices = @transform_7, window_bounds = array<i64: 16, 32>}]} {
    %c0 = arith.constant 0 : index
    %c0_0 = arith.constant 0 : index
    %0 = vector.load %arg1[%c0, %c0_0] : memref<16x32xf32, #tpu.memory_space<vmem>>, vector<16x32xf32>
    %1 = arith.mulf %0, %0 : vector<16x32xf32>
    %cst = arith.constant dense<0.000000e+00> : vector<16xf32>
    %2 = vector.multi_reduction <add>, %1, %cst [1] : vector<16x32xf32> to vector<16xf32>
    %3 = vector.shape_cast %2 : vector<16xf32> to vector<16x1xf32>
    %cst_1 = arith.constant 3.200000e+01 : f32
    %4 = vector.broadcast %cst_1 : f32 to vector<16x1xf32>
    %5 = arith.divf %3, %4 : vector<16x1xf32>
    %cst_2 = arith.constant 9.99999997E-7 : f32
    %6 = vector.broadcast %cst_2 : f32 to vector<16x1xf32>
    %7 = arith.addf %5, %6 : vector<16x1xf32>
    %8 = math.rsqrt %7 : vector<16x1xf32>
    %9 = vector.broadcast %8 : vector<16x1xf32> to vector<16x32xf32>
    %10 = arith.mulf %0, %9 : vector<16x32xf32>
    %c0_3 = arith.constant 0 : index
    %c0_4 = arith.constant 0 : index
    %11 = vector.load %arg2[%c0_3, %c0_4] : memref<1x32xf32, #tpu.memory_space<vmem>>, vector<1x32xf32>
    %12 = vector.broadcast %11 : vector<1x32xf32> to vector<16x32xf32>
    %13 = arith.mulf %10, %12 : vector<16x32xf32>
    %14 = arith.truncf %13 : vector<16x32xf32> to vector<16x32xbf16>
    %c0_5 = arith.constant 0 : index
    %c0_6 = arith.constant 0 : index
    %15 = vector.load %arg3[%c0_5, %c0_6] : memref<32x128xbf16, #tpu.memory_space<vmem>>, vector<32x128xbf16>
    %cst_7 = arith.constant dense<0.000000e+00> : vector<16x128xf32>
    %16 = tpu.matmul %14, %15, %cst_7 {dimension_numbers = #tpu.dot_dimension_numbers<[1], [0], [0], [1], [0, 0, 1, 1], [], []>} : vector<16x32xbf16>, vector<32x128xbf16>, vector<16x128xf32> -> vector<16x128xf32>
    %17 = vector.extract_strided_slice %16 {offsets = [0, 0], sizes = [16, 32], strides = [1, 1]} : vector<16x128xf32> to vector<16x32xf32>
    %18 = vector.extract_strided_slice %16 {offsets = [0, 32], sizes = [16, 32], strides = [1, 1]} : vector<16x128xf32> to vector<16x32xf32>
    %19 = vector.extract_strided_slice %16 {offsets = [0, 64], sizes = [16, 32], strides = [1, 1]} : vector<16x128xf32> to vector<16x32xf32>
    %20 = vector.extract_strided_slice %16 {offsets = [0, 96], sizes = [16, 32], strides = [1, 1]} : vector<16x128xf32> to vector<16x32xf32>
    %21 = arith.negf %17 : vector<16x32xf32>
    %22 = math.exp %21 : vector<16x32xf32>
    %cst_8 = arith.constant 1.000000e+00 : f32
    %23 = vector.broadcast %cst_8 : f32 to vector<16x32xf32>
    %24 = arith.addf %23, %22 : vector<16x32xf32>
    %25 = arith.divf %23, %24 : vector<16x32xf32>
    %26 = arith.mulf %17, %25 : vector<16x32xf32>
    %c0_9 = arith.constant 0 : index
    %c0_10 = arith.constant 0 : index
    %27 = vector.load %arg5[%c0_9, %c0_10] : memref<16x32xf32, #tpu.memory_space<vmem>>, vector<16x32xf32>
    tpu.vector_store %arg5[%c0_9, %c0_10], %26 {strides = array<i32>} : memref<16x32xf32, #tpu.memory_space<vmem>>, vector<16x32xf32>,
    %c0_11 = arith.constant 0 : index
    %c0_12 = arith.constant 0 : index
    %28 = vector.load %arg6[%c0_11, %c0_12] : memref<16x32xf32, #tpu.memory_space<vmem>>, vector<16x32xf32>
    tpu.vector_store %arg6[%c0_11, %c0_12], %18 {strides = array<i32>} : memref<16x32xf32, #tpu.memory_space<vmem>>, vector<16x32xf32>,
    %c0_13 = arith.constant 0 : index
    %c0_14 = arith.constant 0 : index
    %29 = vector.load %arg4[%c0_13, %c0_14] : memref<1x32xf32, #tpu.memory_space<vmem>>, vector<1x32xf32>
    %cst_15 = arith.constant 1.000000e+00 : f32
    %30 = vector.broadcast %cst_15 : f32 to vector<1x32xf32>
    %31 = arith.subf %30, %29 : vector<1x32xf32>
    %32 = arith.negf %19 : vector<16x32xf32>
    %33 = math.exp %32 : vector<16x32xf32>
    %cst_16 = arith.constant 1.000000e+00 : f32
    %34 = vector.broadcast %cst_16 : f32 to vector<16x32xf32>
    %35 = arith.addf %34, %33 : vector<16x32xf32>
    %36 = arith.divf %34, %35 : vector<16x32xf32>
    %37 = vector.broadcast %31 : vector<1x32xf32> to vector<16x32xf32>
    %38 = arith.mulf %37, %36 : vector<16x32xf32>
    %39 = vector.broadcast %29 : vector<1x32xf32> to vector<16x32xf32>
    %40 = arith.addf %39, %38 : vector<16x32xf32>
    %c0_17 = arith.constant 0 : index
    %c0_18 = arith.constant 0 : index
    %41 = vector.load %arg7[%c0_17, %c0_18] : memref<16x32xf32, #tpu.memory_space<vmem>>, vector<16x32xf32>
    tpu.vector_store %arg7[%c0_17, %c0_18], %40 {strides = array<i32>} : memref<16x32xf32, #tpu.memory_space<vmem>>, vector<16x32xf32>,
    %42 = arith.negf %20 : vector<16x32xf32>
    %43 = math.exp %42 : vector<16x32xf32>
    %cst_19 = arith.constant 1.000000e+00 : f32
    %44 = vector.broadcast %cst_19 : f32 to vector<16x32xf32>
    %45 = arith.addf %44, %43 : vector<16x32xf32>
    %46 = arith.divf %44, %45 : vector<16x32xf32>
    %c0_20 = arith.constant 0 : index
    %c0_21 = arith.constant 0 : index
    %47 = vector.load %arg8[%c0_20, %c0_21] : memref<16x32xf32, #tpu.memory_space<vmem>>, vector<16x32xf32>
    tpu.vector_store %arg8[%c0_20, %c0_21], %46 {strides = array<i32>} : memref<16x32xf32, #tpu.memory_space<vmem>>, vector<16x32xf32>,
    return
  }
  func.func @transform_0(%arg0: i32) -> (i32, i32) {
    %c0_i32 = arith.constant 0 : i32
    %c0_i32_0 = arith.constant 0 : i32
    return %arg0, %c0_i32 : i32, i32
  }
  func.func @transform_1(%arg0: i32) -> (i32, i32) {
    %c0_i32 = arith.constant 0 : i32
    %c0_i32_0 = arith.constant 0 : i32
    %c0_i32_1 = arith.constant 0 : i32
    return %c0_i32, %c0_i32_0 : i32, i32
  }
  func.func @transform_2(%arg0: i32) -> (i32, i32) {
    %c0_i32 = arith.constant 0 : i32
    %c0_i32_0 = arith.constant 0 : i32
    %c0_i32_1 = arith.constant 0 : i32
    return %c0_i32, %c0_i32_0 : i32, i32
  }
  func.func @transform_3(%arg0: i32) -> (i32, i32) {
    %c0_i32 = arith.constant 0 : i32
    %c0_i32_0 = arith.constant 0 : i32
    %c0_i32_1 = arith.constant 0 : i32
    return %c0_i32, %c0_i32_0 : i32, i32
  }
  func.func @transform_4(%arg0: i32) -> (i32, i32) {
    %c0_i32 = arith.constant 0 : i32
    %c0_i32_0 = arith.constant 0 : i32
    return %arg0, %c0_i32 : i32, i32
  }
  func.func @transform_5(%arg0: i32) -> (i32, i32) {
    %c0_i32 = arith.constant 0 : i32
    %c0_i32_0 = arith.constant 0 : i32
    return %arg0, %c0_i32 : i32, i32
  }
  func.func @transform_6(%arg0: i32) -> (i32, i32) {
    %c0_i32 = arith.constant 0 : i32
    %c0_i32_0 = arith.constant 0 : i32
    return %arg0, %c0_i32 : i32, i32
  }
  func.func @transform_7(%arg0: i32) -> (i32, i32) {
    %c0_i32 = arith.constant 0 : i32
    %c0_i32_0 = arith.constant 0 : i32
    return %arg0, %c0_i32 : i32, i32
  }
}

module attributes {stable_mosaic.version = 11 : i64} {
  func.func @out_kernel(%arg0: i32, %arg1: memref<16x32xf32, #tpu.memory_space<vmem>>, %arg2: memref<16x32xf32, #tpu.memory_space<vmem>>, %arg3: memref<16x32xf32, #tpu.memory_space<vmem>>, %arg4: memref<32x32xbf16, #tpu.memory_space<vmem>>, %arg5: memref<16x32xf32, #tpu.memory_space<vmem>>) attributes {dimension_semantics = [#tpu.dimension_semantics<parallel>], iteration_bounds = array<i64: 1>, scalar_prefetch = 0 : i64, scratch_operands = 0 : i64, tpu.core_type = #tpu.core_type<tc>, window_params = [{transform_indices = @transform_0, window_bounds = array<i64: 16, 32>}, {transform_indices = @transform_1, window_bounds = array<i64: 16, 32>}, {transform_indices = @transform_2, window_bounds = array<i64: 16, 32>}, {pipeline_mode = #tpu.pipeline_mode<synchronous>, transform_indices = @transform_3, window_bounds = array<i64: 32, 32>}, {transform_indices = @transform_4, window_bounds = array<i64: 16, 32>}]} {
    %c0 = arith.constant 0 : index
    %c0_0 = arith.constant 0 : index
    %0 = vector.load %arg1[%c0, %c0_0] : memref<16x32xf32, #tpu.memory_space<vmem>>, vector<16x32xf32>
    %1 = arith.mulf %0, %0 : vector<16x32xf32>
    %cst = arith.constant dense<0.000000e+00> : vector<16xf32>
    %2 = vector.multi_reduction <add>, %1, %cst [1] : vector<16x32xf32> to vector<16xf32>
    %3 = vector.shape_cast %2 : vector<16xf32> to vector<16x1xf32>
    %cst_1 = arith.constant 3.200000e+01 : f32
    %4 = vector.broadcast %cst_1 : f32 to vector<16x1xf32>
    %5 = arith.divf %3, %4 : vector<16x1xf32>
    %cst_2 = arith.constant 9.99999997E-7 : f32
    %6 = vector.broadcast %cst_2 : f32 to vector<16x1xf32>
    %7 = arith.addf %5, %6 : vector<16x1xf32>
    %8 = math.rsqrt %7 : vector<16x1xf32>
    %9 = vector.broadcast %8 : vector<16x1xf32> to vector<16x32xf32>
    %10 = arith.mulf %0, %9 : vector<16x32xf32>
    %c0_3 = arith.constant 0 : index
    %c0_4 = arith.constant 0 : index
    %11 = vector.load %arg2[%c0_3, %c0_4] : memref<16x32xf32, #tpu.memory_space<vmem>>, vector<16x32xf32>
    %12 = arith.mulf %10, %11 : vector<16x32xf32>
    %13 = arith.truncf %12 : vector<16x32xf32> to vector<16x32xbf16>
    %c0_5 = arith.constant 0 : index
    %c0_6 = arith.constant 0 : index
    %14 = vector.load %arg4[%c0_5, %c0_6] : memref<32x32xbf16, #tpu.memory_space<vmem>>, vector<32x32xbf16>
    %cst_7 = arith.constant dense<0.000000e+00> : vector<16x32xf32>
    %15 = tpu.matmul %13, %14, %cst_7 {dimension_numbers = #tpu.dot_dimension_numbers<[1], [0], [0], [1], [0, 0, 1, 1], [], []>} : vector<16x32xbf16>, vector<32x32xbf16>, vector<16x32xf32> -> vector<16x32xf32>
    %c0_8 = arith.constant 0 : index
    %c0_9 = arith.constant 0 : index
    %16 = vector.load %arg3[%c0_8, %c0_9] : memref<16x32xf32, #tpu.memory_space<vmem>>, vector<16x32xf32>
    %17 = arith.addf %15, %16 : vector<16x32xf32>
    %c0_10 = arith.constant 0 : index
    %c0_11 = arith.constant 0 : index
    %18 = vector.load %arg5[%c0_10, %c0_11] : memref<16x32xf32, #tpu.memory_space<vmem>>, vector<16x32xf32>
    tpu.vector_store %arg5[%c0_10, %c0_11], %17 {strides = array<i32>} : memref<16x32xf32, #tpu.memory_space<vmem>>, vector<16x32xf32>,
    return
  }
  func.func @transform_0(%arg0: i32) -> (i32, i32) {
    %c0_i32 = arith.constant 0 : i32
    %c0_i32_0 = arith.constant 0 : i32
    return %arg0, %c0_i32 : i32, i32
  }
  func.func @transform_1(%arg0: i32) -> (i32, i32) {
    %c0_i32 = arith.constant 0 : i32
    %c0_i32_0 = arith.constant 0 : i32
    return %arg0, %c0_i32 : i32, i32
  }
  func.func @transform_2(%arg0: i32) -> (i32, i32) {
    %c0_i32 = arith.constant 0 : i32
    %c0_i32_0 = arith.constant 0 : i32
    return %arg0, %c0_i32 : i32, i32
  }
  func.func @transform_3(%arg0: i32) -> (i32, i32) {
    %c0_i32 = arith.constant 0 : i32
    %c0_i32_0 = arith.constant 0 : i32
    %c0_i32_1 = arith.constant 0 : i32
    return %c0_i32, %c0_i32_0 : i32, i32
  }
  func.func @transform_4(%arg0: i32) -> (i32, i32) {
    %c0_i32 = arith.constant 0 : i32
    %c0_i32_0 = arith.constant 0 : i32
    return %arg0, %c0_i32 : i32, i32
  }
}

module attributes {stable_mosaic.version = 11 : i64} {
  func.func @scan_kernel(%arg0: i32, %arg1: i32, %arg2: memref<1x8x32xf32, #tpu.memory_space<vmem>>, %arg3: memref<1x8x32xf32, #tpu.memory_space<vmem>>, %arg4: memref<1x8x32xf32, #tpu.memory_space<vmem>>, %arg5: memref<1x8x32xf32, #tpu.memory_space<vmem>>, %arg6: memref<2x16x16xf32, #tpu.memory_space<vmem>>) attributes {dimension_semantics = [#tpu.dimension_semantics<parallel>, #tpu.dimension_semantics<arbitrary>], iteration_bounds = array<i64: 2, 1>, scalar_prefetch = 0 : i64, scratch_operands = 1 : i64, tpu.core_type = #tpu.core_type<tc>, window_params = [{transform_indices = @transform_0, window_bounds = array<i64: 1, 8, 32>}, {transform_indices = @transform_1, window_bounds = array<i64: 1, 8, 32>}, {transform_indices = @transform_2, window_bounds = array<i64: 1, 8, 32>}, {transform_indices = @transform_3, window_bounds = array<i64: 1, 8, 32>}]} {
    %c0_i32 = arith.constant 0 : i32
    %0 = arith.cmpi eq, %arg1, %c0_i32 : i32
    %1 = arith.extui %0 : i1 to i32
    %c0_i32_0 = arith.constant 0 : i32
    %2 = arith.cmpi ne, %1, %c0_i32_0 : i32
    scf.if %2 {
      %cst_40 = arith.constant 0.000000e+00 : f32
      %93 = vector.broadcast %cst_40 : f32 to vector<2x16x16xf32>
      %c0_41 = arith.constant 0 : index
      %c0_42 = arith.constant 0 : index
      %c0_43 = arith.constant 0 : index
      %94 = vector.load %arg6[%c0_41, %c0_42, %c0_43] : memref<2x16x16xf32, #tpu.memory_space<vmem>>, vector<2x16x16xf32>
      tpu.vector_store %arg6[%c0_41, %c0_42, %c0_43], %93 {strides = array<i32>} : memref<2x16x16xf32, #tpu.memory_space<vmem>>, vector<2x16x16xf32>,
    } else {
    }
    %3 = tpu.iota {dimensions = array<i32: 0>} : vector<8x8xi32>
    %4 = tpu.iota {dimensions = array<i32: 1>} : vector<8x8xi32>
    %5 = arith.cmpi sle, %4, %3 : vector<8x8xi32>
    %6 = arith.extui %5 : vector<8x8xi1> to vector<8x8xi32>
    %7 = arith.sitofp %6 : vector<8x8xi32> to vector<8x8xf32>
    %8 = tpu.iota {dimensions = array<i32: 0>} : vector<16x16xi32>
    %9 = tpu.iota {dimensions = array<i32: 1>} : vector<16x16xi32>
    %10 = arith.cmpi eq, %8, %9 : vector<16x16xi32>
    %c0 = arith.constant 0 : index
    %c0_1 = arith.constant 0 : index
    %c0_2 = arith.constant 0 : index
    %11 = vector.load %arg2[%c0, %c0_1, %c0_2] : memref<1x8x32xf32, #tpu.memory_space<vmem>>, vector<1x8x32xf32>
    %12 = vector.shape_cast %11 : vector<1x8x32xf32> to vector<8x32xf32>
    %c0_3 = arith.constant 0 : index
    %c0_4 = arith.constant 0 : index
    %c0_5 = arith.constant 0 : index
    %13 = vector.load %arg4[%c0_3, %c0_4, %c0_5] : memref<1x8x32xf32, #tpu.memory_space<vmem>>, vector<1x8x32xf32>
    %14 = vector.shape_cast %13 : vector<1x8x32xf32> to vector<8x32xf32>
    %c0_6 = arith.constant 0 : index
    %c0_7 = arith.constant 0 : index
    %c0_8 = arith.constant 0 : index
    %15 = vector.load %arg3[%c0_6, %c0_7, %c0_8] : memref<1x8x32xf32, #tpu.memory_space<vmem>>, vector<1x8x32xf32>
    %16 = vector.shape_cast %15 : vector<1x8x32xf32> to vector<8x32xf32>
    %17 = vector.extract_strided_slice %12 {offsets = [0, 0], sizes = [8, 16], strides = [1, 1]} : vector<8x32xf32> to vector<8x16xf32>
    %18 = vector.extract_strided_slice %14 {offsets = [0, 0], sizes = [8, 16], strides = [1, 1]} : vector<8x32xf32> to vector<8x16xf32>
    %19 = vector.extract_strided_slice %16 {offsets = [0, 0], sizes = [8, 16], strides = [1, 1]} : vector<8x32xf32> to vector<8x16xf32>
    %20 = math.log %19 : vector<8x16xf32>
    %cst = arith.constant dense<0.000000e+00> : vector<8x16xf32>
    %21 = tpu.matmul %7, %20, %cst {dimension_numbers = #tpu.dot_dimension_numbers<[1], [0], [0], [1], [0, 0, 1, 1], [], []>} : vector<8x8xf32>, vector<8x16xf32>, vector<8x16xf32> -> vector<8x16xf32>
    %22 = math.exp %21 : vector<8x16xf32>
    %23 = arith.mulf %17, %22 : vector<8x16xf32>
    %cst_9 = arith.constant 1.000000e+00 : f32
    %24 = vector.broadcast %cst_9 : f32 to vector<8x16xf32>
    %25 = arith.subf %24, %19 : vector<8x16xf32>
    %cst_10 = arith.constant 0.000000e+00 : f32
    %26 = vector.broadcast %cst_10 : f32 to vector<8x16xf32>
    %27 = arith.subf %26, %21 : vector<8x16xf32>
    %28 = math.exp %27 : vector<8x16xf32>
    %29 = arith.mulf %25, %28 : vector<8x16xf32>
    %30 = vector.extract_strided_slice %21 {offsets = [7, 0], sizes = [1, 16], strides = [1, 1]} : vector<8x16xf32> to vector<1x16xf32>
    %31 = vector.broadcast %30 : vector<1x16xf32> to vector<8x16xf32>
    %32 = arith.subf %31, %21 : vector<8x16xf32>
    %33 = math.exp %32 : vector<8x16xf32>
    %34 = arith.mulf %25, %33 : vector<8x16xf32>
    %c0_11 = arith.constant 0 : index
    %c0_12 = arith.constant 0 : index
    %c0_13 = arith.constant 0 : index
    %35 = vector.load %arg6[%c0_11, %c0_12, %c0_13] : memref<2x16x16xf32, #tpu.memory_space<vmem>>, vector<1x16x16xf32>
    %36 = vector.shape_cast %35 : vector<1x16x16xf32> to vector<16x16xf32>
    %cst_14 = arith.constant dense<0.000000e+00> : vector<8x8xf32>
    %37 = tpu.matmul %23, %29, %cst_14 {dimension_numbers = #tpu.dot_dimension_numbers<[1], [1], [0], [0], [0, 0, 1, 0], [], []>} : vector<8x16xf32>, vector<8x16xf32>, vector<8x8xf32> -> vector<8x8xf32>
    %38 = arith.mulf %37, %7 : vector<8x8xf32>
    %cst_15 = arith.constant dense<0.000000e+00> : vector<8x16xf32>
    %39 = tpu.matmul %38, %18, %cst_15 {dimension_numbers = #tpu.dot_dimension_numbers<[1], [0], [0], [1], [0, 0, 1, 1], [], []>} : vector<8x8xf32>, vector<8x16xf32>, vector<8x16xf32> -> vector<8x16xf32>
    %cst_16 = arith.constant dense<0.000000e+00> : vector<8x16xf32>
    %40 = tpu.matmul %23, %36, %cst_16 {dimension_numbers = #tpu.dot_dimension_numbers<[1], [0], [0], [1], [0, 0, 1, 1], [], []>} : vector<8x16xf32>, vector<16x16xf32>, vector<8x16xf32> -> vector<8x16xf32>
    %41 = arith.addf %39, %40 : vector<8x16xf32>
    %42 = math.exp %30 : vector<1x16xf32>
    %43 = vector.shape_cast %42 : vector<1x16xf32> to vector<1x16xf32>
    %44 = vector.broadcast %43 : vector<1x16xf32> to vector<16x16xf32>
    %cst_17 = arith.constant 0.000000e+00 : f32
    %45 = vector.broadcast %cst_17 : f32 to vector<16x16xf32>
    %46 = arith.select %10, %44, %45 : vector<16x16xi1>, vector<16x16xf32>
    %cst_18 = arith.constant dense<0.000000e+00> : vector<16x16xf32>
    %47 = tpu.matmul %34, %18, %cst_18 {dimension_numbers = #tpu.dot_dimension_numbers<[0], [0], [1], [1], [0, 1, 1, 1], [], []>} : vector<8x16xf32>, vector<8x16xf32>, vector<16x16xf32> -> vector<16x16xf32>
    %cst_19 = arith.constant dense<0.000000e+00> : vector<16x16xf32>
    %48 = tpu.matmul %46, %36, %cst_19 {dimension_numbers = #tpu.dot_dimension_numbers<[1], [0], [0], [1], [0, 0, 1, 1], [], []>} : vector<16x16xf32>, vector<16x16xf32>, vector<16x16xf32> -> vector<16x16xf32>
    %49 = arith.addf %48, %47 : vector<16x16xf32>
    %c0_20 = arith.constant 0 : index
    %c0_21 = arith.constant 0 : index
    %c0_22 = arith.constant 0 : index
    %50 = vector.load %arg6[%c0_20, %c0_21, %c0_22] : memref<2x16x16xf32, #tpu.memory_space<vmem>>, vector<1x16x16xf32>
    %51 = vector.shape_cast %50 : vector<1x16x16xf32> to vector<16x16xf32>
    %52 = vector.shape_cast %49 : vector<16x16xf32> to vector<1x16x16xf32>
    tpu.vector_store %arg6[%c0_20, %c0_21, %c0_22], %52 {strides = array<i32>} : memref<2x16x16xf32, #tpu.memory_space<vmem>>, vector<1x16x16xf32>,
    %53 = vector.extract_strided_slice %12 {offsets = [0, 16], sizes = [8, 16], strides = [1, 1]} : vector<8x32xf32> to vector<8x16xf32>
    %54 = vector.extract_strided_slice %14 {offsets = [0, 16], sizes = [8, 16], strides = [1, 1]} : vector<8x32xf32> to vector<8x16xf32>
    %55 = vector.extract_strided_slice %16 {offsets = [0, 16], sizes = [8, 16], strides = [1, 1]} : vector<8x32xf32> to vector<8x16xf32>
    %56 = math.log %55 : vector<8x16xf32>
    %cst_23 = arith.constant dense<0.000000e+00> : vector<8x16xf32>
    %57 = tpu.matmul %7, %56, %cst_23 {dimension_numbers = #tpu.dot_dimension_numbers<[1], [0], [0], [1], [0, 0, 1, 1], [], []>} : vector<8x8xf32>, vector<8x16xf32>, vector<8x16xf32> -> vector<8x16xf32>
    %58 = math.exp %57 : vector<8x16xf32>
    %59 = arith.mulf %53, %58 : vector<8x16xf32>
    %cst_24 = arith.constant 1.000000e+00 : f32
    %60 = vector.broadcast %cst_24 : f32 to vector<8x16xf32>
    %61 = arith.subf %60, %55 : vector<8x16xf32>
    %cst_25 = arith.constant 0.000000e+00 : f32
    %62 = vector.broadcast %cst_25 : f32 to vector<8x16xf32>
    %63 = arith.subf %62, %57 : vector<8x16xf32>
    %64 = math.exp %63 : vector<8x16xf32>
    %65 = arith.mulf %61, %64 : vector<8x16xf32>
    %66 = vector.extract_strided_slice %57 {offsets = [7, 0], sizes = [1, 16], strides = [1, 1]} : vector<8x16xf32> to vector<1x16xf32>
    %67 = vector.broadcast %66 : vector<1x16xf32> to vector<8x16xf32>
    %68 = arith.subf %67, %57 : vector<8x16xf32>
    %69 = math.exp %68 : vector<8x16xf32>
    %70 = arith.mulf %61, %69 : vector<8x16xf32>
    %c1 = arith.constant 1 : index
    %c0_26 = arith.constant 0 : index
    %c0_27 = arith.constant 0 : index
    %71 = vector.load %arg6[%c1, %c0_26, %c0_27] : memref<2x16x16xf32, #tpu.memory_space<vmem>>, vector<1x16x16xf32>
    %72 = vector.shape_cast %71 : vector<1x16x16xf32> to vector<16x16xf32>
    %cst_28 = arith.constant dense<0.000000e+00> : vector<8x8xf32>
    %73 = tpu.matmul %59, %65, %cst_28 {dimension_numbers = #tpu.dot_dimension_numbers<[1], [1], [0], [0], [0, 0, 1, 0], [], []>} : vector<8x16xf32>, vector<8x16xf32>, vector<8x8xf32> -> vector<8x8xf32>
    %74 = arith.mulf %73, %7 : vector<8x8xf32>
    %cst_29 = arith.constant dense<0.000000e+00> : vector<8x16xf32>
    %75 = tpu.matmul %74, %54, %cst_29 {dimension_numbers = #tpu.dot_dimension_numbers<[1], [0], [0], [1], [0, 0, 1, 1], [], []>} : vector<8x8xf32>, vector<8x16xf32>, vector<8x16xf32> -> vector<8x16xf32>
    %cst_30 = arith.constant dense<0.000000e+00> : vector<8x16xf32>
    %76 = tpu.matmul %59, %72, %cst_30 {dimension_numbers = #tpu.dot_dimension_numbers<[1], [0], [0], [1], [0, 0, 1, 1], [], []>} : vector<8x16xf32>, vector<16x16xf32>, vector<8x16xf32> -> vector<8x16xf32>
    %77 = arith.addf %75, %76 : vector<8x16xf32>
    %78 = math.exp %66 : vector<1x16xf32>
    %79 = vector.shape_cast %78 : vector<1x16xf32> to vector<1x16xf32>
    %80 = vector.broadcast %79 : vector<1x16xf32> to vector<16x16xf32>
    %cst_31 = arith.constant 0.000000e+00 : f32
    %81 = vector.broadcast %cst_31 : f32 to vector<16x16xf32>
    %82 = arith.select %10, %80, %81 : vector<16x16xi1>, vector<16x16xf32>
    %cst_32 = arith.constant dense<0.000000e+00> : vector<16x16xf32>
    %83 = tpu.matmul %70, %54, %cst_32 {dimension_numbers = #tpu.dot_dimension_numbers<[0], [0], [1], [1], [0, 1, 1, 1], [], []>} : vector<8x16xf32>, vector<8x16xf32>, vector<16x16xf32> -> vector<16x16xf32>
    %cst_33 = arith.constant dense<0.000000e+00> : vector<16x16xf32>
    %84 = tpu.matmul %82, %72, %cst_33 {dimension_numbers = #tpu.dot_dimension_numbers<[1], [0], [0], [1], [0, 0, 1, 1], [], []>} : vector<16x16xf32>, vector<16x16xf32>, vector<16x16xf32> -> vector<16x16xf32>
    %85 = arith.addf %84, %83 : vector<16x16xf32>
    %c1_34 = arith.constant 1 : index
    %c0_35 = arith.constant 0 : index
    %c0_36 = arith.constant 0 : index
    %86 = vector.load %arg6[%c1_34, %c0_35, %c0_36] : memref<2x16x16xf32, #tpu.memory_space<vmem>>, vector<1x16x16xf32>
    %87 = vector.shape_cast %86 : vector<1x16x16xf32> to vector<16x16xf32>
    %88 = vector.shape_cast %85 : vector<16x16xf32> to vector<1x16x16xf32>
    tpu.vector_store %arg6[%c1_34, %c0_35, %c0_36], %88 {strides = array<i32>} : memref<2x16x16xf32, #tpu.memory_space<vmem>>, vector<1x16x16xf32>,
    %89 = tpu.concatenate %41, %77 in 1 : vector<8x16xf32>, vector<8x16xf32> -> vector<8x32xf32>
    %c0_37 = arith.constant 0 : index
    %c0_38 = arith.constant 0 : index
    %c0_39 = arith.constant 0 : index
    %90 = vector.load %arg5[%c0_37, %c0_38, %c0_39] : memref<1x8x32xf32, #tpu.memory_space<vmem>>, vector<1x8x32xf32>
    %91 = vector.shape_cast %90 : vector<1x8x32xf32> to vector<8x32xf32>
    %92 = vector.shape_cast %89 : vector<8x32xf32> to vector<1x8x32xf32>
    tpu.vector_store %arg5[%c0_37, %c0_38, %c0_39], %92 {strides = array<i32>} : memref<1x8x32xf32, #tpu.memory_space<vmem>>, vector<1x8x32xf32>,
    return
  }
  func.func @transform_0(%arg0: i32, %arg1: i32) -> (i32, i32, i32) {
    %c0_i32 = arith.constant 0 : i32
    %c0_i32_0 = arith.constant 0 : i32
    return %arg0, %arg1, %c0_i32 : i32, i32, i32
  }
  func.func @transform_1(%arg0: i32, %arg1: i32) -> (i32, i32, i32) {
    %c0_i32 = arith.constant 0 : i32
    %c0_i32_0 = arith.constant 0 : i32
    return %arg0, %arg1, %c0_i32 : i32, i32, i32
  }
  func.func @transform_2(%arg0: i32, %arg1: i32) -> (i32, i32, i32) {
    %c0_i32 = arith.constant 0 : i32
    %c0_i32_0 = arith.constant 0 : i32
    return %arg0, %arg1, %c0_i32 : i32, i32, i32
  }
  func.func @transform_3(%arg0: i32, %arg1: i32) -> (i32, i32, i32) {
    %c0_i32 = arith.constant 0 : i32
    %c0_i32_0 = arith.constant 0 : i32
    return %arg0, %arg1, %c0_i32 : i32, i32, i32
  }
}

module attributes {stable_mosaic.version = 11 : i64} {
  func.func @glu_kernel(%arg0: i32, %arg1: memref<16x32xf32, #tpu.memory_space<vmem>>, %arg2: memref<1x32xf32, #tpu.memory_space<vmem>>, %arg3: memref<32x128xbf16, #tpu.memory_space<vmem>>, %arg4: memref<64x32xbf16, #tpu.memory_space<vmem>>, %arg5: memref<16x32xf32, #tpu.memory_space<vmem>>) attributes {dimension_semantics = [#tpu.dimension_semantics<parallel>], iteration_bounds = array<i64: 1>, scalar_prefetch = 0 : i64, scratch_operands = 0 : i64, tpu.core_type = #tpu.core_type<tc>, window_params = [{transform_indices = @transform_0, window_bounds = array<i64: 16, 32>}, {pipeline_mode = #tpu.pipeline_mode<synchronous>, transform_indices = @transform_1, window_bounds = array<i64: 1, 32>}, {pipeline_mode = #tpu.pipeline_mode<synchronous>, transform_indices = @transform_2, window_bounds = array<i64: 32, 128>}, {pipeline_mode = #tpu.pipeline_mode<synchronous>, transform_indices = @transform_3, window_bounds = array<i64: 64, 32>}, {transform_indices = @transform_4, window_bounds = array<i64: 16, 32>}]} {
    %c0 = arith.constant 0 : index
    %c0_0 = arith.constant 0 : index
    %0 = vector.load %arg1[%c0, %c0_0] : memref<16x32xf32, #tpu.memory_space<vmem>>, vector<16x32xf32>
    %1 = arith.mulf %0, %0 : vector<16x32xf32>
    %cst = arith.constant dense<0.000000e+00> : vector<16xf32>
    %2 = vector.multi_reduction <add>, %1, %cst [1] : vector<16x32xf32> to vector<16xf32>
    %3 = vector.shape_cast %2 : vector<16xf32> to vector<16x1xf32>
    %cst_1 = arith.constant 3.200000e+01 : f32
    %4 = vector.broadcast %cst_1 : f32 to vector<16x1xf32>
    %5 = arith.divf %3, %4 : vector<16x1xf32>
    %cst_2 = arith.constant 9.99999997E-7 : f32
    %6 = vector.broadcast %cst_2 : f32 to vector<16x1xf32>
    %7 = arith.addf %5, %6 : vector<16x1xf32>
    %8 = math.rsqrt %7 : vector<16x1xf32>
    %9 = vector.broadcast %8 : vector<16x1xf32> to vector<16x32xf32>
    %10 = arith.mulf %0, %9 : vector<16x32xf32>
    %c0_3 = arith.constant 0 : index
    %c0_4 = arith.constant 0 : index
    %11 = vector.load %arg2[%c0_3, %c0_4] : memref<1x32xf32, #tpu.memory_space<vmem>>, vector<1x32xf32>
    %12 = vector.broadcast %11 : vector<1x32xf32> to vector<16x32xf32>
    %13 = arith.mulf %10, %12 : vector<16x32xf32>
    %14 = arith.truncf %13 : vector<16x32xf32> to vector<16x32xbf16>
    %c0_5 = arith.constant 0 : index
    %c0_6 = arith.constant 0 : index
    %15 = vector.load %arg3[%c0_5, %c0_6] : memref<32x128xbf16, #tpu.memory_space<vmem>>, vector<32x128xbf16>
    %cst_7 = arith.constant dense<0.000000e+00> : vector<16x128xf32>
    %16 = tpu.matmul %14, %15, %cst_7 {dimension_numbers = #tpu.dot_dimension_numbers<[1], [0], [0], [1], [0, 0, 1, 1], [], []>} : vector<16x32xbf16>, vector<32x128xbf16>, vector<16x128xf32> -> vector<16x128xf32>
    %17 = vector.extract_strided_slice %16 {offsets = [0, 0], sizes = [16, 64], strides = [1, 1]} : vector<16x128xf32> to vector<16x64xf32>
    %18 = vector.extract_strided_slice %16 {offsets = [0, 64], sizes = [16, 64], strides = [1, 1]} : vector<16x128xf32> to vector<16x64xf32>
    %19 = arith.negf %17 : vector<16x64xf32>
    %20 = math.exp %19 : vector<16x64xf32>
    %cst_8 = arith.constant 1.000000e+00 : f32
    %21 = vector.broadcast %cst_8 : f32 to vector<16x64xf32>
    %22 = arith.addf %21, %20 : vector<16x64xf32>
    %23 = arith.divf %21, %22 : vector<16x64xf32>
    %24 = arith.mulf %17, %23 : vector<16x64xf32>
    %25 = arith.mulf %24, %18 : vector<16x64xf32>
    %26 = arith.truncf %25 : vector<16x64xf32> to vector<16x64xbf16>
    %c0_9 = arith.constant 0 : index
    %c0_10 = arith.constant 0 : index
    %27 = vector.load %arg4[%c0_9, %c0_10] : memref<64x32xbf16, #tpu.memory_space<vmem>>, vector<64x32xbf16>
    %cst_11 = arith.constant dense<0.000000e+00> : vector<16x32xf32>
    %28 = tpu.matmul %26, %27, %cst_11 {dimension_numbers = #tpu.dot_dimension_numbers<[1], [0], [0], [1], [0, 0, 1, 1], [], []>} : vector<16x64xbf16>, vector<64x32xbf16>, vector<16x32xf32> -> vector<16x32xf32>
    %29 = arith.addf %28, %0 : vector<16x32xf32>
    %c0_12 = arith.constant 0 : index
    %c0_13 = arith.constant 0 : index
    %30 = vector.load %arg5[%c0_12, %c0_13] : memref<16x32xf32, #tpu.memory_space<vmem>>, vector<16x32xf32>
    tpu.vector_store %arg5[%c0_12, %c0_13], %29 {strides = array<i32>} : memref<16x32xf32, #tpu.memory_space<vmem>>, vector<16x32xf32>,
    return
  }
  func.func @transform_0(%arg0: i32) -> (i32, i32) {
    %c0_i32 = arith.constant 0 : i32
    %c0_i32_0 = arith.constant 0 : i32
    return %arg0, %c0_i32 : i32, i32
  }
  func.func @transform_1(%arg0: i32) -> (i32, i32) {
    %c0_i32 = arith.constant 0 : i32
    %c0_i32_0 = arith.constant 0 : i32
    %c0_i32_1 = arith.constant 0 : i32
    return %c0_i32, %c0_i32_0 : i32, i32
  }
  func.func @transform_2(%arg0: i32) -> (i32, i32) {
    %c0_i32 = arith.constant 0 : i32
    %c0_i32_0 = arith.constant 0 : i32
    %c0_i32_1 = arith.constant 0 : i32
    return %c0_i32, %c0_i32_0 : i32, i32
  }
  func.func @transform_3(%arg0: i32) -> (i32, i32) {
    %c0_i32 = arith.constant 0 : i32
    %c0_i32_0 = arith.constant 0 : i32
    %c0_i32_1 = arith.constant 0 : i32
    return %c0_i32, %c0_i32_0 : i32, i32
  }
  func.func @transform_4(%arg0: i32) -> (i32, i32) {
    %c0_i32 = arith.constant 0 : i32
    %c0_i32_0 = arith.constant 0 : i32
    return %arg0, %c0_i32 : i32, i32
  }
}

</mosaic_0001>

<llo_original>
// kernel: metala_layer_forward.6
$region0: #{metala_layer_forward.6}
  #allocation0 [shape = 'u32[]', space=smem, size = 0x4, offset = 0x4, fixed_abs, tag = 'smem constant byte address 0x4 - core index']
  #allocation1 [shape = 'u32[72,128]{1,0:T(1,128)}', space=vmem, size = 0x9000, scoped, tag = 'internal scratch']
  %s0 = inlined_call_operand.vmem [shape: f32[16,32], index: 0, kind: input, shape index: {}]
  %s1 = inlined_call_operand.vmem [shape: f32[16,32], index: 1, kind: input, shape index: {}]
  %s2 = inlined_call_operand.vmem [shape: f32[16,32], index: 2, kind: input, shape index: {}]
  %s3 = inlined_call_operand.hbm [shape: bf16[32,32], index: 3, kind: input, shape index: {}]
  %s4 = inlined_call_operand.vmem [shape: f32[16,32], index: 4, kind: output, shape index: {}]
  %s5 = sld [smem:[#allocation0]]
  $region30: #{metala_layer_forward.6} parent=0
    _
  %s7 = ssub.s32 1, %s5
  %s8 = scalar_select 0, %s7, %s5
  $region1: #{metala_layer_forward.6} parent=0
    #allocation2 [shape = 'u8[8192]{0}', space=vmem, size = 0x2000, scoped, tag = 'input window, operand 3, single buffered']
    #allocation3 [shape = 's32[1]{0}', space=sflag, size = 0x4, scoped, tag = 'scoped memory for metala_layer_forward.6']
    %9 = vsyncpa [#allocation3], 0
    // Predicated region
    $region2: #{metala_layer_forward.6} parent=1 // pred_check
      _
    $region3: #{metala_layer_forward.6} parent=1 // pred_check_branch
      %11 = sbr.rel (0) target = $region5
    $region4: #{metala_layer_forward.6} parent=1 // pred_region
      _
    $region5: #{metala_layer_forward.6} parent=1 // pred_fallthru
      _
    // Predicated region
    $region6: #{metala_layer_forward.6} parent=1 // pred_check
      _
    $region7: #{metala_layer_forward.6} parent=1 // pred_check_branch
      %13 = sbr.rel (0) target = $region9
    $region8: #{metala_layer_forward.6} parent=1 // pred_region
      _
    $region9: #{metala_layer_forward.6} parent=1 // pred_fallthru
      _
    // Predicated region
    $region10: #{metala_layer_forward.6} parent=1 // pred_check
      _
    $region11: #{metala_layer_forward.6} parent=1 // pred_check_branch
      %15 = sbr.rel (0) target = $region13
    $region12: #{metala_layer_forward.6} parent=1 // pred_region
      _
    $region13: #{metala_layer_forward.6} parent=1 // pred_fallthru
      _
    // Predicated region
    $region14: #{metala_layer_forward.6} parent=1 // pred_check
      _
    $region15: #{metala_layer_forward.6} parent=1 // pred_check_branch
      %17 = sbr.rel (0) target = $region17
    $region16: #{metala_layer_forward.6} parent=1 // pred_region
      %19 = vsyncadd [#allocation3], 0
      %s20 = sshll.u32 %s3, 4
      %s21 = int_to_ptr.hbm [resolvable:$true] %s20
      %s22 = sshll.u32 [#allocation2], 4
      %s23 = int_to_ptr.vmem [resolvable:$true] %s22
      %28 = dma.hbm_to_vmem [thread:$0]  %s21, 256, %s23, [#allocation3], 64, 64, 4
    $region17: #{metala_layer_forward.6} parent=1 // pred_fallthru
      _
    // Predicated region
    $region18: #{metala_layer_forward.6} parent=1 // pred_check
      _
    $region19: #{metala_layer_forward.6} parent=1 // pred_check_branch
      %30 = sbr.rel (0) target = $region21
    $region20: #{metala_layer_forward.6} parent=1 // pred_region
      %32 = dma.done [#allocation3], 256
    $region21: #{metala_layer_forward.6} parent=1 // pred_fallthru
      _
    %v34 = vld [vmem:[%s0] sm:$0xff]
    %v35 = vld [vmem:[%s0 + $0x8] sm:$0xff]
    %v36 = vmul.f32 %v34, %v34
    %v37 = vmul.f32 %v35, %v35
    %vm38 = vcmask 261120
    %v39 = vsel %vm38, %v36, 0.0
    %40 = vadd.xlane.f32.xlu0 %v39
    %v41 = vpop.xlane.xlu0 %40
    %v42 = vsel %vm38, %v37, 0.0
    %43 = vadd.xlane.f32.xlu0 %v42
    %v44 = vpop.xlane.xlu0 %43
    %v45 = vrcp.pop 32.0
    %v46 = vmul.f32 32.0, %v45
    %v47 = vsub.f32 1.0, %v46
    %v48 = vmul.f32 %v45, %v47
    %v49 = vadd.f32 %v45, %v48
    %vm50 = vweird.f32 %v45
    %v51 = vsel %vm50, %v45, %v49
    %v52 = vmul.f32 %v41, %v51
    %v53 = vmul.f32 %v44, %v51
    %v54 = vadd.f32 %v52, 1e-06
    %v55 = vadd.f32 %v53, 1e-06
    %v56 = vrsqrt.pop %v54
    %v57 = vmul.f32 %v56, %v54
    %v58 = vmul.f32 %v57, %v56
    %v59 = vmul.f32 0.5, %v58
    %v60 = vsub.f32 1.5, %v59
    %v61 = vmul.f32 %v56, %v60
    %vm62 = vweird.f32 %v54
    %vm63 = vweird.f32 %v56
    %vm64 = vmor %vm62, %vm63
    %v65 = vsel %vm64, %v56, %v61
    %v66 = vrsqrt.pop %v55
    %v67 = vmul.f32 %v66, %v55
    %v68 = vmul.f32 %v67, %v66
    %v69 = vmul.f32 0.5, %v68
    %v70 = vsub.f32 1.5, %v69
    %v71 = vmul.f32 %v66, %v70
    %vm72 = vweird.f32 %v55
    %vm73 = vweird.f32 %v66
    %vm74 = vmor %vm72, %vm73
    %v75 = vsel %vm74, %v66, %v71
    %v76 = vmul.f32 %v34, %v65
    %v77 = vmul.f32 %v35, %v75
    %v78 = vld [vmem:[%s1] sm:$0xff]
    %v79 = vld [vmem:[%s1 + $0x8] sm:$0xff]
    %v80 = vmul.f32 %v76, %v78
    %v81 = vmul.f32 %v77, %v79
    %v82 = vpack.c.bf16 %v81, %v80
    %v83 = vld [vmem:[#allocation2] sm:$0xf]
    %v84 = vld [vmem:[#allocation2 + $0x4] sm:$0xf]
    %v85 = vld [vmem:[#allocation2 + $0x8] sm:$0xf]
    %v86 = vld [vmem:[#allocation2 + $0xc] sm:$0xf]
    %v87 = vld [vmem:[%s2] sm:$0xff]
    %v88 = vld [vmem:[%s2 + $0x8] sm:$0xff]
    %v93 = vunpack.c.l.b16 %v83
    %v94 = vunpack.c.l.b16 %v84
    %v95 = vunpack.c.l.b16 %v85
    %v96 = vunpack.c.l.b16 %v86
    %v97 = vpack.c.b16 %v94, %v93
    %v98 = vpack.c.b16 %v96, %v95
    %v102 = vsel %vm38, %v82, 0
    %104 = vmatpush.bf16.msra.mxu0 0
    %105 = vmatpush.bf16.msra.mxu0 0
    %106 = vmatpush.bf16.msra.mxu0 0
    %107 = vmatpush.bf16.msra.mxu0 0
    %108 = vmatpush.bf16.msra.mxu0 0
    %109 = vmatpush.bf16.msra.mxu0 0
    %110 = vmatpush.bf16.msra.mxu0 %v98
    %111 = vmatpush.bf16.msra.mxu0 %v97
    %112 = vmatmul.bf16.gmra.mxu0 %v102
    %v113 = vpop.f32.mrf.mxu0
    %v114 = vadd.f32 %v87, %v113
    %v115 = vpop.f32.mrf.mxu0
    %v116 = vadd.f32 %v88, %v115
    %117 = vdwg.mxu0
    %118 = vst.msk [vmem:[%s4] sm:$0xff] %vm38, %v114
    %119 = vst.msk [vmem:[%s4 + $0x8] sm:$0xff] %vm38, %v116
    // Predicated region
    $region22: #{metala_layer_forward.6} parent=1 // pred_check
      _
    $region23: #{metala_layer_forward.6} parent=1 // pred_check_branch
      %121 = sbr.rel (0) target = $region25
    $region24: #{metala_layer_forward.6} parent=1 // pred_region
      _
    $region25: #{metala_layer_forward.6} parent=1 // pred_fallthru
      _
    // Predicated region
    $region26: #{metala_layer_forward.6} parent=1 // pred_check
      _
    $region27: #{metala_layer_forward.6} parent=1 // pred_check_branch
      %123 = sbr.rel (0) target = $region29
    $region28: #{metala_layer_forward.6} parent=1 // pred_region
      _
    $region29: #{metala_layer_forward.6} parent=1 // pred_fallthru
      _
    %124 = vsyncpa [#allocation3], 1

// kernel: metala_layer_forward.4
$region0: #{metala_layer_forward.4}
  #allocation0 [shape = 'u32[]', space=smem, size = 0x4, offset = 0x4, fixed_abs, tag = 'smem constant byte address 0x4 - core index']
  #allocation1 [shape = 'u32[72,128]{1,0:T(1,128)}', space=vmem, size = 0x9000, scoped, tag = 'internal scratch']
  %s0 = inlined_call_operand.hbm [shape: f32[16,32], index: 0, kind: input, shape index: {}]
  %s1 = inlined_call_operand.hbm [shape: f32[1,32], index: 1, kind: input, shape index: {}]
  %s2 = inlined_call_operand.hbm [shape: bf16[32,128], index: 2, kind: input, shape index: {}]
  %s3 = inlined_call_operand.hbm [shape: f32[1,32], index: 3, kind: input, shape index: {}]
  %s4 = inlined_call_operand.vmem [shape: f32[16,32], index: 4, kind: output, shape index: {0}]
  %s5 = inlined_call_operand.vmem [shape: f32[16,32], index: 5, kind: output, shape index: {1}]
  %s6 = inlined_call_operand.vmem [shape: f32[16,32], index: 6, kind: output, shape index: {2}]
  %s7 = inlined_call_operand.vmem [shape: f32[16,32], index: 7, kind: output, shape index: {3}]
  %8 = xla_tuple %s4, %s5, %s6, %s7
  %s9 = sld [smem:[#allocation0]]
  $region66: #{metala_layer_forward.4} parent=0
    _
  %s11 = ssub.s32 1, %s9
  %s12 = scalar_select 0, %s11, %s9
  $region1: #{metala_layer_forward.4} parent=0
    #allocation2 [shape = 'u8[8192]{0}', space=vmem, size = 0x2000, scoped, tag = 'input window, operand 0, single buffered']
    #allocation3 [shape = 's32[1]{0}', space=sflag, size = 0x4, scoped, tag = 'scoped memory for metala_layer_forward.4']
    #allocation4 [shape = 'u8[512]{0}', space=vmem, size = 0x400, scoped, tag = 'input window, operand 1, single buffered']
    #allocation5 [shape = 's32[1]{0}', space=sflag, size = 0x4, scoped, tag = 'scoped memory for metala_layer_forward.4']
    #allocation6 [shape = 'u8[8192]{0}', space=vmem, size = 0x2000, scoped, tag = 'input window, operand 2, single buffered']
    #allocation7 [shape = 'u8[512]{0}', space=vmem, size = 0x400, scoped, tag = 'input window, operand 3, single buffered']
    #allocation8 [shape = 's32[1]{0}', space=sflag, size = 0x4, scoped, tag = 'scoped memory for metala_layer_forward.4']
    %13 = vsyncpa [#allocation3], 0
    %14 = vsyncpa [#allocation5], 0
    %15 = vsyncpa [#allocation8], 0
    // Predicated region
    $region2: #{metala_layer_forward.4} parent=1 // pred_check
      _
    $region3: #{metala_layer_forward.4} parent=1 // pred_check_branch
      %17 = sbr.rel (0) target = $region5
    $region4: #{metala_layer_forward.4} parent=1 // pred_region
      %19 = vsyncadd [#allocation3], 0
      %s20 = sshll.u32 %s0, 4
      %s21 = int_to_ptr.hbm [resolvable:$true] %s20
      %s22 = sshll.u32 [#allocation2], 4
      %s23 = int_to_ptr.vmem [resolvable:$true] %s22
      %28 = dma.hbm_to_vmem [thread:$0]  %s21, 256, %s23, [#allocation3], 128, 128, 8
    $region5: #{metala_layer_forward.4} parent=1 // pred_fallthru
      _
    // Predicated region
    $region6: #{metala_layer_forward.4} parent=1 // pred_check
      _
    $region7: #{metala_layer_forward.4} parent=1 // pred_check_branch
      %30 = sbr.rel (0) target = $region9
    $region8: #{metala_layer_forward.4} parent=1 // pred_region
      %32 = vsyncadd [#allocation5], 0
      %s34 = sshll.u32 %s1, 4
      %s35 = int_to_ptr.hbm [resolvable:$true] %s34
      %s36 = sshll.u32 [#allocation4], 4
      %s37 = int_to_ptr.vmem [resolvable:$true] %s36
      %39 = dma.hbm_to_vmem [thread:$0]  %s35, 16, %s37, [#allocation5]
    $region9: #{metala_layer_forward.4} parent=1 // pred_fallthru
      _
    // Predicated region
    $region10: #{metala_layer_forward.4} parent=1 // pred_check
      _
    $region11: #{metala_layer_forward.4} parent=1 // pred_check_branch
      %41 = sbr.rel (0) target = $region13
    $region12: #{metala_layer_forward.4} parent=1 // pred_region
      %43 = vsyncadd [#allocation5], 0
      %s44 = sshll.u32 %s2, 4
      %s45 = int_to_ptr.hbm [resolvable:$true] %s44
      %s46 = sshll.u32 [#allocation6], 4
      %s47 = int_to_ptr.vmem [resolvable:$true] %s46
      %52 = dma.hbm_to_vmem [thread:$0]  %s45, 256, %s47, [#allocation5], 64, 64, 4
    $region13: #{metala_layer_forward.4} parent=1 // pred_fallthru
      _
    // Predicated region
    $region14: #{metala_layer_forward.4} parent=1 // pred_check
      _
    $region15: #{metala_layer_forward.4} parent=1 // pred_check_branch
      %54 = sbr.rel (0) target = $region17
    $region16: #{metala_layer_forward.4} parent=1 // pred_region
      %56 = vsyncadd [#allocation8], 0
      %s58 = sshll.u32 %s3, 4
      %s59 = int_to_ptr.hbm [resolvable:$true] %s58
      %s60 = sshll.u32 [#allocation7], 4
      %s61 = int_to_ptr.vmem [resolvable:$true] %s60
      %63 = dma.hbm_to_vmem [thread:$0]  %s59, 16, %s61, [#allocation8]
    $region17: #{metala_layer_forward.4} parent=1 // pred_fallthru
      _
    // Predicated region
    $region18: #{metala_layer_forward.4} parent=1 // pred_check
      _
    $region19: #{metala_layer_forward.4} parent=1 // pred_check_branch
      %65 = sbr.rel (0) target = $region21
    $region20: #{metala_layer_forward.4} parent=1 // pred_region
      %67 = dma.done [#allocation3], 256
    $region21: #{metala_layer_forward.4} parent=1 // pred_fallthru
      _
    // Predicated region
    $region22: #{metala_layer_forward.4} parent=1 // pred_check
      _
    $region23: #{metala_layer_forward.4} parent=1 // pred_check_branch
      %69 = sbr.rel (0) target = $region25
    $region24: #{metala_layer_forward.4} parent=1 // pred_region
      %71 = dma.done [#allocation5], 16
    $region25: #{metala_layer_forward.4} parent=1 // pred_fallthru
      _
    // Predicated region
    $region26: #{metala_layer_forward.4} parent=1 // pred_check
      _
    $region27: #{metala_layer_forward.4} parent=1 // pred_check_branch
      %73 = sbr.rel (0) target = $region29
    $region28: #{metala_layer_forward.4} parent=1 // pred_region
      %75 = dma.done [#allocation5], 256
    $region29: #{metala_layer_forward.4} parent=1 // pred_fallthru
      _
    // Predicated region
    $region30: #{metala_layer_forward.4} parent=1 // pred_check
      _
    $region31: #{metala_layer_forward.4} parent=1 // pred_check_branch
      %77 = sbr.rel (0) target = $region33
    $region32: #{metala_layer_forward.4} parent=1 // pred_region
      %79 = dma.done [#allocation8], 16
    $region33: #{metala_layer_forward.4} parent=1 // pred_fallthru
      _
    %v81 = vld [vmem:[#allocation2] sm:$0xff]
    %v82 = vld [vmem:[#allocation2 + $0x8] sm:$0xff]
    %v83 = vmul.f32 %v81, %v81
    %v84 = vmul.f32 %v82, %v82
    %vm85 = vcmask 261120
    %v86 = vsel %vm85, %v83, 0.0
    %87 = vadd.xlane.f32.xlu0 %v86
    %v88 = vpop.xlane.xlu0 %87
    %v89 = vsel %vm85, %v84, 0.0
    %90 = vadd.xlane.f32.xlu0 %v89
    %v91 = vpop.xlane.xlu0 %90
    %v92 = vrcp.pop 32.0
    %v93 = vmul.f32 32.0, %v92
    %v94 = vsub.f32 1.0, %v93
    %v95 = vmul.f32 %v92, %v94
    %v96 = vadd.f32 %v92, %v95
    %vm97 = vweird.f32 %v92
    %v98 = vsel %vm97, %v92, %v96
    %v99 = vmul.f32 %v88, %v98
    %v100 = vmul.f32 %v91, %v98
    %v101 = vadd.f32 %v99, 1e-06
    %v102 = vadd.f32 %v100, 1e-06
    %v103 = vrsqrt.pop %v101
    %v104 = vmul.f32 %v103, %v101
    %v105 = vmul.f32 %v104, %v103
    %v106 = vmul.f32 0.5, %v105
    %v107 = vsub.f32 1.5, %v106
    %v108 = vmul.f32 %v103, %v107
    %vm109 = vweird.f32 %v101
    %vm110 = vweird.f32 %v103
    %vm111 = vmor %vm109, %vm110
    %v112 = vsel %vm111, %v103, %v108
    %v113 = vrsqrt.pop %v102
    %v114 = vmul.f32 %v113, %v102
    %v115 = vmul.f32 %v114, %v113
    %v116 = vmul.f32 0.5, %v115
    %v117 = vsub.f32 1.5, %v116
    %v118 = vmul.f32 %v113, %v117
    %vm119 = vweird.f32 %v102
    %vm120 = vweird.f32 %v113
    %vm121 = vmor %vm119, %vm120
    %v122 = vsel %vm121, %v113, %v118
    %v123 = vmul.f32 %v81, %v112
    %v124 = vmul.f32 %v82, %v122
    %v125 = vld [vmem:[#allocation4] sm:$0x1]
    %v127 = vperm.slane %v125, 0
    %v129 = vmul.f32 %v123, %v127
    %v130 = vmul.f32 %v124, %v127
    %v131 = vpack.c.bf16 %v130, %v129
    %v132 = vld [vmem:[#allocation6] sm:$0xf]
    %v133 = vld [vmem:[#allocation6 + $0x4] sm:$0xf]
    %v134 = vld [vmem:[#allocation6 + $0x8] sm:$0xf]
    %v135 = vld [vmem:[#allocation6 + $0xc] sm:$0xf]
    %v140 = vunpack.c.l.b16 %v132
    %v141 = vunpack.c.l.b16 %v133
    %v142 = vunpack.c.l.b16 %v134
    %v143 = vunpack.c.l.b16 %v135
    %v144 = vpack.c.b16 %v141, %v140
    %v145 = vpack.c.b16 %v143, %v142
    %v149 = vsel %vm85, %v131, 0
    %151 = vmatpush.bf16.msra.mxu0 0
    %152 = vmatpush.bf16.msra.mxu0 0
    %153 = vmatpush.bf16.msra.mxu0 0
    %154 = vmatpush.bf16.msra.mxu0 0
    %155 = vmatpush.bf16.msra.mxu0 0
    %156 = vmatpush.bf16.msra.mxu0 0
    %157 = vmatpush.bf16.msra.mxu0 %v145
    %158 = vmatpush.bf16.msra.mxu0 %v144
    %159 = vmatmul.bf16.gmra.mxu0 %v149
    %v160 = vpop.f32.mrf.mxu0
    %v161 = vadd.f32 0.0, %v160
    %v162 = vpop.f32.mrf.mxu0
    %v163 = vadd.f32 0.0, %v162
    %164 = vdwg.mxu0
    %v165 = vxor.u32 %v161, 2147483648
    %v166 = vxor.u32 %v163, 2147483648
    %v167 = vmul.f32 %v165, 1.442695
    %v168 = vpow.pop %v167
    %v169 = vmul.f32 %v166, 1.442695
    %v170 = vpow.pop %v169
    %v171 = vadd.f32 %v168, 1.0
    %v172 = vadd.f32 %v170, 1.0
    %v173 = vrcp.pop %v171
    %v174 = vmul.f32 %v171, %v173
    %v175 = vsub.f32 1.0, %v174
    %v176 = vmul.f32 %v173, %v175
    %v177 = vadd.f32 %v173, %v176
    %vm178 = vweird.f32 %v171
    %vm179 = vweird.f32 %v173
    %vm180 = vmor %vm178, %vm179
    %v181 = vsel %vm180, %v173, %v177
    %v182 = vand.u32 2147483647, %v171
    %vm183 = vcmp.eq.f32.partialorder %v182, 8.507059e+37
    %v184 = vand.u32 %v171, 2147483648
    %v185 = vor.u32 1.1754944e-38, %v184
    %v186 = vsel %vm183, %v185, %v181
    %v187 = vmul.f32 1.0, %v186
    %v188 = vrcp.pop %v172
    %v189 = vmul.f32 %v172, %v188
    %v190 = vsub.f32 1.0, %v189
    %v191 = vmul.f32 %v188, %v190
    %v192 = vadd.f32 %v188, %v191
    %vm193 = vweird.f32 %v172
    %vm194 = vweird.f32 %v188
    %vm195 = vmor %vm193, %vm194
    %v196 = vsel %vm195, %v188, %v192
    %v197 = vand.u32 2147483647, %v172
    %vm198 = vcmp.eq.f32.partialorder %v197, 8.507059e+37
    %v199 = vand.u32 %v172, 2147483648
    %v200 = vor.u32 1.1754944e-38, %v199
    %v201 = vsel %vm198, %v200, %v196
    %v202 = vmul.f32 1.0, %v201
    %v203 = vmul.f32 %v161, %v187
    %v204 = vmul.f32 %v163, %v202
    %205 = vst.msk [vmem:[%s4] sm:$0xff] %vm85, %v203
    %206 = vst.msk [vmem:[%s4 + $0x8] sm:$0xff] %vm85, %v204
    %209 = vrot.lane.b32.xlu0 %v161, 96
    %v210 = vpop.permute.xlu0 %209
    %211 = vrot.lane.b32.xlu0 %v163, 96
    %v212 = vpop.permute.xlu0 %211
    %215 = vst.msk [vmem:[%s5] sm:$0xff] %vm85, %v210
    %216 = vst.msk [vmem:[%s5 + $0x8] sm:$0xff] %vm85, %v212
    %v217 = vld [vmem:[#allocation7] sm:$0x1]
    %v218 = vsub.f32 1.0, %v217
    %v220 = vperm.slane %v218, 0
    %224 = vrot.lane.b32.xlu0 %v187, 64
    %v225 = vpop.permute.xlu0 %224
    %226 = vrot.lane.b32.xlu0 %v202, 64
    %v227 = vpop.permute.xlu0 %226
    %v230 = vmul.f32 %v220, %v225
    %v231 = vmul.f32 %v220, %v227
    %v233 = vperm.slane %v217, 0
    %v235 = vadd.f32 %v233, %v230
    %v236 = vadd.f32 %v233, %v231
    %237 = vst.msk [vmem:[%s6] sm:$0xff] %vm85, %v235
    %238 = vst.msk [vmem:[%s6 + $0x8] sm:$0xff] %vm85, %v236
    %239 = vrot.lane.b32.xlu0 %v187, 32
    %v240 = vpop.permute.xlu0 %239
    %241 = vrot.lane.b32.xlu0 %v202, 32
    %v242 = vpop.permute.xlu0 %241
    %245 = vst.msk [vmem:[%s7] sm:$0xff] %vm85, %v240
    %246 = vst.msk [vmem:[%s7 + $0x8] sm:$0xff] %vm85, %v242
    // Predicated region
    $region34: #{metala_layer_forward.4} parent=1 // pred_check
      _
    $region35: #{metala_layer_forward.4} parent=1 // pred_check_branch
      %248 = sbr.rel (0) target = $region37
    $region36: #{metala_layer_forward.4} parent=1 // pred_region
      _
    $region37: #{metala_layer_forward.4} parent=1 // pred_fallthru
      _
    // Predicated region
    $region38: #{metala_layer_forward.4} parent=1 // pred_check
      _
    $region39: #{metala_layer_forward.4} parent=1 // pred_check_branch
      %250 = sbr.rel (0) target = $region41
    $region40: #{metala_layer_forward.4} parent=1 // pred_region
      _
    $region41: #{metala_layer_forward.4} parent=1 // pred_fallthru
      _
    // Predicated region
    $region42: #{metala_layer_forward.4} parent=1 // pred_check
      _
    $region43: #{metala_layer_forward.4} parent=1 // pred_check_branch
      %252 = sbr.rel (0) target = $region45
    $region44: #{metala_layer_forward.4} parent=1 // pred_region
      _
    $region45: #{metala_layer_forward.4} parent=1 // pred_fallthru
      _
    // Predicated region
    $region46: #{metala_layer_forward.4} parent=1 // pred_check
      _
    $region47: #{metala_layer_forward.4} parent=1 // pred_check_branch
      %254 = sbr.rel (0) target = $region49
    $region48: #{metala_layer_forward.4} parent=1 // pred_region
      _
    $region49: #{metala_layer_forward.4} parent=1 // pred_fallthru
      _
    // Predicated region
    $region50: #{metala_layer_forward.4} parent=1 // pred_check
      _
    $region51: #{metala_layer_forward.4} parent=1 // pred_check_branch
      %256 = sbr.rel (0) target = $region53
    $region52: #{metala_layer_forward.4} parent=1 // pred_region
      _
    $region53: #{metala_layer_forward.4} parent=1 // pred_fallthru
      _
    // Predicated region
    $region54: #{metala_layer_forward.4} parent=1 // pred_check
      _
    $region55: #{metala_layer_forward.4} parent=1 // pred_check_branch
      %258 = sbr.rel (0) target = $region57
    $region56: #{metala_layer_forward.4} parent=1 // pred_region
      _
    $region57: #{metala_layer_forward.4} parent=1 // pred_fallthru
      _
    // Predicated region
    $region58: #{metala_layer_forward.4} parent=1 // pred_check
      _
    $region59: #{metala_layer_forward.4} parent=1 // pred_check_branch
      %260 = sbr.rel (0) target = $region61
    $region60: #{metala_layer_forward.4} parent=1 // pred_region
      _
    $region61: #{metala_layer_forward.4} parent=1 // pred_fallthru
      _
    // Predicated region
    $region62: #{metala_layer_forward.4} parent=1 // pred_check
      _
    $region63: #{metala_layer_forward.4} parent=1 // pred_check_branch
      %262 = sbr.rel (0) target = $region65
    $region64: #{metala_layer_forward.4} parent=1 // pred_region
      _
    $region65: #{metala_layer_forward.4} parent=1 // pred_fallthru
      _
    %263 = vsyncpa [#allocation3], 1
    %264 = vsyncpa [#allocation5], 1
    %265 = vsyncpa [#allocation8], 1

// kernel: metala_layer_forward.5
$region0: #{metala_layer_forward.5}
  #allocation0 [shape = 'u32[]', space=smem, size = 0x4, offset = 0x4, fixed_abs, tag = 'smem constant byte address 0x4 - core index']
  #allocation1 [shape = 'u32[72,128]{1,0:T(1,128)}', space=vmem, size = 0x9000, scoped, tag = 'internal scratch']
  #allocation2 [shape = 'f32[2,16,16]{2,1,0:T(8,128)}', space=vmem, size = 0x4000, scoped, tag = 'scratch operand']
  %s0 = inlined_call_operand.vmem [shape: f32[2,8,32], index: 0, kind: input, shape index: {}]
  %s1 = inlined_call_operand.vmem [shape: f32[2,8,32], index: 1, kind: input, shape index: {}]
  %s2 = inlined_call_operand.vmem [shape: f32[2,8,32], index: 2, kind: input, shape index: {}]
  %s3 = inlined_call_operand.vmem [shape: f32[2,8,32], index: 3, kind: output, shape index: {}]
  %s4 = sld [smem:[#allocation0]]
  $region49: #{metala_layer_forward.5} parent=0
    _
  %s6 = ssub.s32 1, %s4
  %s7 = scalar_select 0, %s6, %s4
  loop: start=0, step=1, limit=4
  $region2: #{metala_layer_forward.5} parent=0 // loop_pre_header
    _
  $region3: #{metala_layer_forward.5} parent=0 // loop_header
    %s9 = sphi 0, %s13
    %p10 = scmp.ge.s32.totalorder %s9, 4
    %s16 = sphi 0, %s28
    %s17 = sphi 0, %s24
    %s18 = sphi 0, %s16
    %s19 = sphi 0, %s17
    %s20 = sphi 0, %s18
    %s21 = sphi 0, %s19
    %s33 = sphi 0, %s35
    %s36 = sphi 0, %s33
    %s37 = sphi 0, %s36
    %s53 = sphi 0, %s37
    %s61 = sphi 0, %s63
    %s64 = sphi 0, %s61
    %s65 = sphi 0, %s64
    %s81 = sphi 0, %s65
    %s89 = sphi 0, %s91
    %s92 = sphi 0, %s89
    %s93 = sphi 0, %s92
    %s109 = sphi 0, %s93
    %s117 = sphi 0, %s119
    %s120 = sphi 0, %s117
    %s121 = sphi 0, %s120
    %s137 = sphi 0, %s121
  $region4: #{metala_layer_forward.5} parent=0 // loop_header_branch
    %12 = sbr.rel (%p10) target = $region8
  $region5: #{metala_layer_forward.5} parent=0 // loop_body
    %s14 = ssub.s32 %s9, 1
    %s15 = ssub.s32 %s9, 2
    %s22 = sadd.s32 1, %s17
    %p23 = scmp.ge.s32.totalorder %s22, 1
    %s24 = scalar_select %p23, 0, %s22
    %s25 = sadd.s32 1, %s16
    %s26 = scalar_select %p23, %s25, %s16
    %p27 = scmp.ge.s32.totalorder %s26, 2
    %s28 = scalar_select %p27, 0, %s26
    %s29 = ssub.s32 %s16, %s28
    %s30 = ssub.s32 %s17, %s24
    %s31 = sor.u32 %s29, %s30
    %p32 = scmp.eq.s32.totalorder %s31, 0
    %s34 = sadd.s32 %s33, 1
    %s35 = scalar_select %p32, %s33, %s34
    %p38 = pneg %p32
    %p39 = scmp.eq.s32.totalorder %s9, 1
    %p40 = por %p38, %p39
    %p41 = scmp.ne.s32.totalorder %s33, %s36
    %p42 = scmp.eq.s32.totalorder %s9, 0
    %p43 = por %p41, %p42
    %p44 = scmp.ne.s32.totalorder %s33, %s36
    %p45 = scmp.eq.s32.totalorder %s14, 1
    %p46 = por %p44, %p45
    %p47 = scmp.ne.s32.totalorder %s36, %s37
    %p48 = scmp.eq.s32.totalorder %s14, 0
    %p49 = por %p47, %p48
    %p50 = scmp.ne.s32.totalorder %s36, %s37
    %p51 = scmp.eq.s32.totalorder %s15, 1
    %p52 = por %p50, %p51
    %p54 = scmp.ne.s32.totalorder %s37, %s53
    %p55 = scmp.eq.s32.totalorder %s15, 0
    %p56 = por %p54, %p55
    %s57 = ssub.s32 %s16, %s28
    %s58 = ssub.s32 %s17, %s24
    %s59 = sor.u32 %s57, %s58
    %p60 = scmp.eq.s32.totalorder %s59, 0
    %s62 = sadd.s32 %s61, 1
    %s63 = scalar_select %p60, %s61, %s62
    %p66 = pneg %p60
    %p67 = scmp.eq.s32.totalorder %s9, 1
    %p68 = por %p66, %p67
    %p69 = scmp.ne.s32.totalorder %s61, %s64
    %p70 = scmp.eq.s32.totalorder %s9, 0
    %p71 = por %p69, %p70
    %p72 = scmp.ne.s32.totalorder %s61, %s64
    %p73 = scmp.eq.s32.totalorder %s14, 1
    %p74 = por %p72, %p73
    %p75 = scmp.ne.s32.totalorder %s64, %s65
    %p76 = scmp.eq.s32.totalorder %s14, 0
    %p77 = por %p75, %p76
    %p78 = scmp.ne.s32.totalorder %s64, %s65
    %p79 = scmp.eq.s32.totalorder %s15, 1
    %p80 = por %p78, %p79
    %p82 = scmp.ne.s32.totalorder %s65, %s81
    %p83 = scmp.eq.s32.totalorder %s15, 0
    %p84 = por %p82, %p83
    %s85 = ssub.s32 %s16, %s28
    %s86 = ssub.s32 %s17, %s24
    %s87 = sor.u32 %s85, %s86
    %p88 = scmp.eq.s32.totalorder %s87, 0
    %s90 = sadd.s32 %s89, 1
    %s91 = scalar_select %p88, %s89, %s90
    %p94 = pneg %p88
    %p95 = scmp.eq.s32.totalorder %s9, 1
    %p96 = por %p94, %p95
    %p97 = scmp.ne.s32.totalorder %s89, %s92
    %p98 = scmp.eq.s32.totalorder %s9, 0
    %p99 = por %p97, %p98
    %p100 = scmp.ne.s32.totalorder %s89, %s92
    %p101 = scmp.eq.s32.totalorder %s14, 1
    %p102 = por %p100, %p101
    %p103 = scmp.ne.s32.totalorder %s92, %s93
    %p104 = scmp.eq.s32.totalorder %s14, 0
    %p105 = por %p103, %p104
    %p106 = scmp.ne.s32.totalorder %s92, %s93
    %p107 = scmp.eq.s32.totalorder %s15, 1
    %p108 = por %p106, %p107
    %p110 = scmp.ne.s32.totalorder %s93, %s109
    %p111 = scmp.eq.s32.totalorder %s15, 0
    %p112 = por %p110, %p111
    %s113 = ssub.s32 %s16, %s28
    %s114 = ssub.s32 %s17, %s24
    %s115 = sor.u32 %s113, %s114
    %p116 = scmp.eq.s32.totalorder %s115, 0
    %s118 = sadd.s32 %s117, 1
    %s119 = scalar_select %p116, %s117, %s118
    %p122 = pneg %p116
    %p123 = scmp.eq.s32.totalorder %s9, 1
    %p124 = por %p122, %p123
    %p125 = scmp.ne.s32.totalorder %s117, %s120
    %p126 = scmp.eq.s32.totalorder %s9, 0
    %p127 = por %p125, %p126
    %p128 = scmp.ne.s32.totalorder %s117, %s120
    %p129 = scmp.eq.s32.totalorder %s14, 1
    %p130 = por %p128, %p129
    %p131 = scmp.ne.s32.totalorder %s120, %s121
    %p132 = scmp.eq.s32.totalorder %s14, 0
    %p133 = por %p131, %p132
    %p134 = scmp.ne.s32.totalorder %s120, %s121
    %p135 = scmp.eq.s32.totalorder %s15, 1
    %p136 = por %p134, %p135
    %p138 = scmp.ne.s32.totalorder %s121, %s137
    %p139 = scmp.eq.s32.totalorder %s15, 0
    %p140 = por %p138, %p139
    %p141 = scmp.le.s32.totalorder 1, %s9
    %p142 = scmp.lt.s32.totalorder %s9, 3
    %p143 = pnand %p141, %p142
    %p144 = pneg %p143
    // Predicated region
    $region9: #{metala_layer_forward.5} parent=5 // pred_check
      _
    $region10: #{metala_layer_forward.5} parent=5 // pred_check_branch
      %146 = sbr.rel (%p143) target = $region12
    $region11: #{metala_layer_forward.5} parent=5 // pred_region
      %s147 = ssub.s32 %s9, 1
    $region12: #{metala_layer_forward.5} parent=5 // pred_fallthru
      _
    %p148 = scmp.lt.s32.totalorder %s9, 2
    // Predicated region
    $region13: #{metala_layer_forward.5} parent=5 // pred_check
      %p149 = pneg %p148
    $region14: #{metala_layer_forward.5} parent=5 // pred_check_branch
      %151 = sbr.rel (%p149) target = $region16
    $region15: #{metala_layer_forward.5} parent=5 // pred_region
      // Predicated region
      $region17: #{metala_layer_forward.5} parent=15 // pred_check
        %p152 = pneg %p43
      $region18: #{metala_layer_forward.5} parent=15 // pred_check_branch
        %154 = sbr.rel (%p152) target = $region20
      $region19: #{metala_layer_forward.5} parent=15 // pred_region
        %p155 = scmp.lt.s32.totalorder %s16, 1
        %s156 = scalar_select %p155, %s16, 1
        %p157 = scmp.lt.s32.totalorder %s17, 0
        %s158 = scalar_select %p157, %s17, 0
        %s159 = sadd.s32 %s158, %s156
        %s160 = smul.addr %s159, 8
        %s161 = scalar_lea.vmem %s0, %s160
      $region20: #{metala_layer_forward.5} parent=15 // pred_fallthru
        _
      // Predicated region
      $region21: #{metala_layer_forward.5} parent=15 // pred_check
        %p162 = pneg %p71
      $region22: #{metala_layer_forward.5} parent=15 // pred_check_branch
        %164 = sbr.rel (%p162) target = $region24
      $region23: #{metala_layer_forward.5} parent=15 // pred_region
        %p165 = scmp.lt.s32.totalorder %s16, 1
        %s166 = scalar_select %p165, %s16, 1
        %p167 = scmp.lt.s32.totalorder %s17, 0
        %s168 = scalar_select %p167, %s17, 0
        %s169 = sadd.s32 %s168, %s166
        %s170 = smul.addr %s169, 8
        %s171 = scalar_lea.vmem %s1, %s170
      $region24: #{metala_layer_forward.5} parent=15 // pred_fallthru
        _
      // Predicated region
      $region25: #{metala_layer_forward.5} parent=15 // pred_check
        %p172 = pneg %p99
      $region26: #{metala_layer_forward.5} parent=15 // pred_check_branch
        %174 = sbr.rel (%p172) target = $region28
      $region27: #{metala_layer_forward.5} parent=15 // pred_region
        %p175 = scmp.lt.s32.totalorder %s16, 1
        %s176 = scalar_select %p175, %s16, 1
        %p177 = scmp.lt.s32.totalorder %s17, 0
        %s178 = scalar_select %p177, %s17, 0
        %s179 = sadd.s32 %s178, %s176
        %s180 = smul.addr %s179, 8
        %s181 = scalar_lea.vmem %s2, %s180
      $region28: #{metala_layer_forward.5} parent=15 // pred_fallthru
        _
    $region16: #{metala_layer_forward.5} parent=5 // pred_fallthru
      _
    %p182 = scmp.le.s32.totalorder 1, %s9
    %p183 = scmp.lt.s32.totalorder %s9, 3
    %p184 = pnand %p182, %p183
    %p185 = pneg %p184
    // Predicated region
    $region29: #{metala_layer_forward.5} parent=5 // pred_check
      _
    $region30: #{metala_layer_forward.5} parent=5 // pred_check_branch
      %187 = sbr.rel (%p184) target = $region32
    $region31: #{metala_layer_forward.5} parent=5 // pred_region
      %s188 = ssub.s32 %s9, 1
      %p189 = scmp.lt.s32.totalorder %s18, 1
      %s190 = scalar_select %p189, %s18, 1
      %p191 = scmp.lt.s32.totalorder %s19, 0
      %s192 = scalar_select %p191, %s19, 0
      %s193 = sadd.s32 %s192, %s190
      %s194 = smul.addr %s193, 8
      %s195 = scalar_lea.vmem %s0, %s194
      %p196 = pneg %p49
      %p197 = pneg %p46
      %p198 = scmp.lt.s32.totalorder %s18, 1
      %s199 = scalar_select %p198, %s18, 1
      %p200 = scmp.lt.s32.totalorder %s19, 0
      %s201 = scalar_select %p200, %s19, 0
      %s202 = sadd.s32 %s201, %s199
      %s203 = smul.addr %s202, 8
      %s204 = scalar_lea.vmem %s1, %s203
      %p205 = pneg %p77
      %p206 = pneg %p74
      %p207 = scmp.lt.s32.totalorder %s18, 1
      %s208 = scalar_select %p207, %s18, 1
      %p209 = scmp.lt.s32.totalorder %s19, 0
      %s210 = scalar_select %p209, %s19, 0
      %s211 = sadd.s32 %s210, %s208
      %s212 = smul.addr %s211, 8
      %s213 = scalar_lea.vmem %s2, %s212
      %p214 = pneg %p105
      %p215 = pneg %p102
      %p216 = pneg %p133
      %p217 = pneg %p130
      %p218 = scmp.lt.s32.totalorder %s18, 1
      %s219 = scalar_select %p218, %s18, 1
      %p220 = scmp.lt.s32.totalorder %s19, 0
      %s221 = scalar_select %p220, %s19, 0
      %s222 = sadd.s32 %s221, %s219
      %s223 = smul.addr %s222, 8
      %s224 = scalar_lea.vmem %s3, %s223
      %p225 = scmp.lt.s32.totalorder %s18, 1
      %s226 = scalar_select %p225, %s18, 1
      %p227 = scmp.lt.s32.totalorder %s19, 0
      %s228 = scalar_select %p227, %s19, 0
      %s229 = sadd.s32 %s228, %s226
      %s230 = smul.addr %s229, 8
      %s231 = scalar_lea.vmem %s0, %s230
      %p232 = scmp.lt.s32.totalorder %s18, 1
      %s233 = scalar_select %p232, %s18, 1
      %p234 = scmp.lt.s32.totalorder %s19, 0
      %s235 = scalar_select %p234, %s19, 0
      %s236 = sadd.s32 %s235, %s233
      %s237 = smul.addr %s236, 8
      %s238 = scalar_lea.vmem %s1, %s237
      %p239 = scmp.lt.s32.totalorder %s18, 1
      %s240 = scalar_select %p239, %s18, 1
      %p241 = scmp.lt.s32.totalorder %s19, 0
      %s242 = scalar_select %p241, %s19, 0
      %s243 = sadd.s32 %s242, %s240
      %s244 = smul.addr %s243, 8
      %s245 = scalar_lea.vmem %s2, %s244
      %p246 = scmp.lt.s32.totalorder %s18, 1
      %s247 = scalar_select %p246, %s18, 1
      %p248 = scmp.lt.s32.totalorder %s19, 0
      %s249 = scalar_select %p248, %s19, 0
      %s250 = sadd.s32 %s249, %s247
      %s251 = smul.addr %s250, 8
      %s252 = scalar_lea.vmem %s3, %s251
      %p253 = scmp.eq.s32.totalorder %s19, 0
      // Predicated region
      $region33: #{metala_layer_forward.5} parent=31 // pred_check
        %p254 = pneg %p253
      $region34: #{metala_layer_forward.5} parent=31 // pred_check_branch
        %256 = sbr.rel (%p254) target = $region36
      $region35: #{metala_layer_forward.5} parent=31 // pred_region
        %vm257 = vcmask 130048
        %258 = vst.msk [vmem:[#allocation2] sm:$0xff] %vm257, 0.0
        %259 = vst.msk [vmem:[#allocation2 + $0x8] sm:$0xff] %vm257, 0.0
        %260 = vst.msk [vmem:[#allocation2 + $0x10] sm:$0xff] %vm257, 0.0
        %261 = vst.msk [vmem:[#allocation2 + $0x18] sm:$0xff] %vm257, 0.0
      $region36: #{metala_layer_forward.5} parent=31 // pred_fallthru
        _
      %v262 = vlaneseq
      %v263 = vshrl.u32 %v262, 7
      %v264 = vlaneseq
      %v265 = vand.u32 %v264, 127
      %vm266 = vcmp.le.s32.totalorder %v265, %v263
      %v267 = vsel %vm266, 1, 0
      %v268 = vcvt.s32.f32 %v267
      %v269 = vadd.s32 %v263, 8
      %vm270 = vcmp.eq.s32.totalorder %v263, %v265
      %vm271 = vcmp.eq.s32.totalorder %v269, %v265
      %v272 = vld [vmem:[%s231] sm:$0xff]
      %v273 = vld [vmem:[%s245] sm:$0xff]
      %v274 = vld [vmem:[%s238] sm:$0xff]
      %v275 = vlog2.pop %v274
      %v276 = vmul.f32 %v275, 0.6931472
      %vm277 = vcmask 64512
      %v279 = vsel %vm277, %v268, 0
      %281 = vmatpush.msra.mxu0 0.0
      %282 = vmatpush.msra.mxu0 0.0
      %283 = vmatpush.msra.mxu0 0.0
      %284 = vmatpush.msra.mxu0 0.0
      %285 = vmatpush.msra.mxu0 0.0
      %286 = vmatpush.msra.mxu0 0.0
      %287 = vmatpush.msra.mxu0 0.0
      %288 = vmatpush.msra.mxu0 0.0
      %289 = vmatpush.msra.mxu0 0.0
      %290 = vmatpush.msra.mxu0 0.0
      %291 = vmatpush.msra.mxu0 0.0
      %292 = vmatpush.msra.mxu0 0.0
      %293 = vmatpush.msra.mxu0 0.0
      %294 = vmatpush.msra.mxu0 0.0
      %295 = vmatpush.msra.mxu0 0.0
      %296 = vmatpush.msra.mxu0 %v276
      %297 = vmatmul.f32.gmra.mxu0 %v279
      %v298 = vpop.f32.mrf.mxu0
      %v299 = vadd.f32 0.0, %v298
      %300 = vdwg.mxu0
      %v301 = vmul.f32 %v299, 1.442695
      %v302 = vpow.pop %v301
      %v303 = vmul.f32 %v272, %v302
      %v304 = vsub.f32 1.0, %v274
      %v305 = vsub.f32 0.0, %v299
      %v306 = vmul.f32 %v305, 1.442695
      %v307 = vpow.pop %v306
      %v308 = vmul.f32 %v304, %v307
      %v309 = vperm.slane %v299, 7
      %v310 = vsub.f32 %v309, %v299
      %v311 = vmul.f32 %v310, 1.442695
      %v312 = vpow.pop %v311
      %v313 = vmul.f32 %v304, %v312
      %v314 = vld [vmem:[#allocation2] sm:$0xff]
      %v315 = vld [vmem:[#allocation2 + $0x8] sm:$0xff]
      %vm316 = vcmask 130048
      %v318 = vsel %vm316, %v303, 0
      %v321 = vsel %vm316, %v308, 0
      %323 = vmatpush.xpose.msra.mxu0 0.0
      %324 = vmatpush.xpose.msra.mxu0 0.0
      %325 = vmatpush.xpose.msra.mxu0 0.0
      %326 = vmatpush.xpose.msra.mxu0 0.0
      %327 = vmatpush.xpose.msra.mxu0 0.0
      %328 = vmatpush.xpose.msra.mxu0 0.0
      %329 = vmatpush.xpose.msra.mxu0 0.0
      %330 = vmatpush.xpose.msra.mxu0 0.0
      %331 = vmatpush.xpose.msra.mxu0 0.0
      %332 = vmatpush.xpose.msra.mxu0 0.0
      %333 = vmatpush.xpose.msra.mxu0 0.0
      %334 = vmatpush.xpose.msra.mxu0 0.0
      %335 = vmatpush.xpose.msra.mxu0 0.0
      %336 = vmatpush.xpose.msra.mxu0 0.0
      %337 = vmatpush.xpose.msra.mxu0 0.0
      %338 = vmatpush.xpose.msra.mxu0 %v321
      %339 = vmatmul.f32.gmra.mxu0 %v318
      %v340 = vpop.f32.mrf.mxu0
      %v341 = vadd.f32 0.0, %v340
      %342 = vdwg.mxu0
      %v343 = vmul.f32 %v341, %v268
      %344 = vmatpush.msra.mxu0 0.0
      %345 = vmatpush.msra.mxu0 0.0
      %346 = vmatpush.msra.mxu0 0.0
      %347 = vmatpush.msra.mxu0 0.0
      %348 = vmatpush.msra.mxu0 0.0
      %349 = vmatpush.msra.mxu0 0.0
      %350 = vmatpush.msra.mxu0 0.0
      %351 = vmatpush.msra.mxu0 0.0
      %352 = vmatpush.msra.mxu0 0.0
      %353 = vmatpush.msra.mxu0 0.0
      %354 = vmatpush.msra.mxu0 0.0
      %355 = vmatpush.msra.mxu0 0.0
      %356 = vmatpush.msra.mxu0 0.0
      %357 = vmatpush.msra.mxu0 0.0
      %358 = vmatpush.msra.mxu0 %v315
      %359 = vmatpush.msra.mxu0 %v314
      %360 = vmatmul.f32.gmra.mxu0 %v318
      %v361 = vpop.f32.mrf.mxu0
      %v362 = vadd.f32 0.0, %v361
      %363 = vdwg.mxu0
      %v365 = vsel %vm277, %v343, 0
      %367 = vmatpush.msra.mxu0 0.0
      %368 = vmatpush.msra.mxu0 0.0
      %369 = vmatpush.msra.mxu0 0.0
      %370 = vmatpush.msra.mxu0 0.0
      %371 = vmatpush.msra.mxu0 0.0
      %372 = vmatpush.msra.mxu0 0.0
      %373 = vmatpush.msra.mxu0 0.0
      %374 = vmatpush.msra.mxu0 0.0
      %375 = vmatpush.msra.mxu0 0.0
      %376 = vmatpush.msra.mxu0 0.0
      %377 = vmatpush.msra.mxu0 0.0
      %378 = vmatpush.msra.mxu0 0.0
      %379 = vmatpush.msra.mxu0 0.0
      %380 = vmatpush.msra.mxu0 0.0
      %381 = vmatpush.msra.mxu0 0.0
      %382 = vmatpush.msra.mxu0 %v273
      %383 = vmatmul.f32.gmra.mxu0 %v365
      %v384 = vpop.f32.mrf.mxu0
      %v385 = vadd.f32 %v362, %v384
      %386 = vdwg.mxu0
      %v387 = vperm.slane %v302, 7
      %v388 = vsel %vm270, %v387, 0.0
      %v389 = vsel %vm271, %v387, 0.0
      %390 = vxpose.xlu0.b32.start [1/16] %v313, 128
      %391 = vxpose.xlu0.b32.cont [2/16] 0.0, 128
      %392 = vxpose.xlu0.b32.cont [3/16] 0.0, 128
      %393 = vxpose.xlu0.b32.cont [4/16] 0.0, 128
      %394 = vxpose.xlu0.b32.cont [5/16] 0.0, 128
      %395 = vxpose.xlu0.b32.cont [6/16] 0.0, 128
      %396 = vxpose.xlu0.b32.cont [7/16] 0.0, 128
      %397 = vxpose.xlu0.b32.cont [8/16] 0.0, 128
      %398 = vxpose.xlu0.b32.cont [9/16] 0.0, 128
      %399 = vxpose.xlu0.b32.cont [10/16] 0.0, 128
      %400 = vxpose.xlu0.b32.cont [11/16] 0.0, 128
      %401 = vxpose.xlu0.b32.cont [12/16] 0.0, 128
      %402 = vxpose.xlu0.b32.cont [13/16] 0.0, 128
      %403 = vxpose.xlu0.b32.cont [14/16] 0.0, 128
      %404 = vxpose.xlu0.b32.cont [15/16] 0.0, 128
      %405 = vxpose.xlu0.b32.end [16/16] 0.0, 128
      %v406 = vpop.trf.xlu0
      %v407 = vpop.trf.xlu0
      %v408 = vpop.trf.xlu0
      %v409 = vpop.trf.xlu0
      %v410 = vpop.trf.xlu0
      %v411 = vpop.trf.xlu0
      %v412 = vpop.trf.xlu0
      %v413 = vpop.trf.xlu0
      %v414 = vpop.trf.xlu0
      %v415 = vpop.trf.xlu0
      %v416 = vpop.trf.xlu0
      %v417 = vpop.trf.xlu0
      %v418 = vpop.trf.xlu0
      %v419 = vpop.trf.xlu0
      %v420 = vpop.trf.xlu0
      %v421 = vpop.trf.xlu0
      %v423 = vsel %vm277, %v406, 0
      %v426 = vsel %vm277, %v407, 0
      %428 = vmatpush.msra.mxu0 0.0
      %429 = vmatpush.msra.mxu0 0.0
      %430 = vmatpush.msra.mxu0 0.0
      %431 = vmatpush.msra.mxu0 0.0
      %432 = vmatpush.msra.mxu0 0.0
      %433 = vmatpush.msra.mxu0 0.0
      %434 = vmatpush.msra.mxu0 0.0
      %435 = vmatpush.msra.mxu0 0.0
      %436 = vmatpush.msra.mxu0 0.0
      %437 = vmatpush.msra.mxu0 0.0
      %438 = vmatpush.msra.mxu0 0.0
      %439 = vmatpush.msra.mxu0 0.0
      %440 = vmatpush.msra.mxu0 0.0
      %441 = vmatpush.msra.mxu0 0.0
      %442 = vmatpush.msra.mxu0 0.0
      %443 = vmatpush.msra.mxu0 %v273
      %444 = vmatmul.f32.gmra.mxu0 %v423
      %v445 = vpop.f32.mrf.mxu0
      %v446 = vadd.f32 0.0, %v445
      %447 = vmatmul.f32.gmra.mxu0 %v426
      %v448 = vpop.f32.mrf.mxu0
      %v449 = vadd.f32 0.0, %v448
      %450 = vdwg.mxu0
      %v452 = vsel %vm316, %v388, 0
      %v455 = vsel %vm316, %v389, 0
      %457 = vmatpush.msra.mxu0 0.0
      %458 = vmatpush.msra.mxu0 0.0
      %459 = vmatpush.msra.mxu0 0.0
      %460 = vmatpush.msra.mxu0 0.0
      %461 = vmatpush.msra.mxu0 0.0
      %462 = vmatpush.msra.mxu0 0.0
      %463 = vmatpush.msra.mxu0 0.0
      %464 = vmatpush.msra.mxu0 0.0
      %465 = vmatpush.msra.mxu0 0.0
      %466 = vmatpush.msra.mxu0 0.0
      %467 = vmatpush.msra.mxu0 0.0
      %468 = vmatpush.msra.mxu0 0.0
      %469 = vmatpush.msra.mxu0 0.0
      %470 = vmatpush.msra.mxu0 0.0
      %471 = vmatpush.msra.mxu0 %v315
      %472 = vmatpush.msra.mxu0 %v314
      %473 = vmatmul.f32.gmra.mxu0 %v452
      %v474 = vpop.f32.mrf.mxu0
      %v475 = vadd.f32 %v446, %v474
      %476 = vmatmul.f32.gmra.mxu0 %v455
      %v477 = vpop.f32.mrf.mxu0
      %v478 = vadd.f32 %v449, %v477
      %479 = vdwg.mxu0
      %480 = vst.msk [vmem:[#allocation2] sm:$0xff] %vm316, %v475
      %481 = vst.msk [vmem:[#allocation2 + $0x8] sm:$0xff] %vm316, %v478
      %483 = vrot.lane.b32.xlu0 %v276, 112
      %v484 = vpop.permute.xlu0 %483
      %486 = vmatpush.msra.mxu0 0.0
      %487 = vmatpush.msra.mxu0 0.0
      %488 = vmatpush.msra.mxu0 0.0
      %489 = vmatpush.msra.mxu0 0.0
      %490 = vmatpush.msra.mxu0 0.0
      %491 = vmatpush.msra.mxu0 0.0
      %492 = vmatpush.msra.mxu0 0.0
      %493 = vmatpush.msra.mxu0 0.0
      %494 = vmatpush.msra.mxu0 0.0
      %495 = vmatpush.msra.mxu0 0.0
      %496 = vmatpush.msra.mxu0 0.0
      %497 = vmatpush.msra.mxu0 0.0
      %498 = vmatpush.msra.mxu0 0.0
      %499 = vmatpush.msra.mxu0 0.0
      %500 = vmatpush.msra.mxu0 0.0
      %501 = vmatpush.msra.mxu0 %v484
      %502 = vmatmul.f32.gmra.mxu0 %v279
      %v503 = vpop.f32.mrf.mxu0
      %v504 = vadd.f32 0.0, %v503
      %505 = vdwg.mxu0
      %v506 = vmul.f32 %v504, 1.442695
      %v507 = vpow.pop %v506
      %509 = vrot.lane.b32.xlu0 %v507, 16
      %v510 = vpop.permute.xlu0 %509
      %v512 = vmul.f32 %v272, %v510
      %v513 = vsub.f32 0.0, %v504
      %v514 = vmul.f32 %v513, 1.442695
      %v515 = vpow.pop %v514
      %517 = vrot.lane.b32.xlu0 %v515, 16
      %v518 = vpop.permute.xlu0 %517
      %v520 = vmul.f32 %v304, %v518
      %v521 = vperm.slane %v504, 7
      %v522 = vsub.f32 %v521, %v504
      %v523 = vmul.f32 %v522, 1.442695
      %v524 = vpow.pop %v523
      %526 = vrot.lane.b32.xlu0 %v524, 16
      %v527 = vpop.permute.xlu0 %526
      %v529 = vmul.f32 %v304, %v527
      %s530 = scalar_lea.vmem [#allocation2], 16
      %v531 = vld [vmem:[%s530] sm:$0xff]
      %v532 = vld [vmem:[%s530 + $0x8] sm:$0xff]
      %534 = vrot.lane.b32.xlu0 %v512, 112
      %v535 = vpop.permute.xlu0 %534
      %537 = vrot.lane.b32.xlu0 %v520, 112
      %v538 = vpop.permute.xlu0 %537
      %v539 = vsel %vm316, %v535, 0
      %v541 = vsel %vm316, %v538, 0
      %543 = vmatpush.xpose.msra.mxu0 0.0
      %544 = vmatpush.xpose.msra.mxu0 0.0
      %545 = vmatpush.xpose.msra.mxu0 0.0
      %546 = vmatpush.xpose.msra.mxu0 0.0
      %547 = vmatpush.xpose.msra.mxu0 0.0
      %548 = vmatpush.xpose.msra.mxu0 0.0
      %549 = vmatpush.xpose.msra.mxu0 0.0
      %550 = vmatpush.xpose.msra.mxu0 0.0
      %551 = vmatpush.xpose.msra.mxu0 0.0
      %552 = vmatpush.xpose.msra.mxu0 0.0
      %553 = vmatpush.xpose.msra.mxu0 0.0
      %554 = vmatpush.xpose.msra.mxu0 0.0
      %555 = vmatpush.xpose.msra.mxu0 0.0
      %556 = vmatpush.xpose.msra.mxu0 0.0
      %557 = vmatpush.xpose.msra.mxu0 0.0
      %558 = vmatpush.xpose.msra.mxu0 %v541
      %559 = vmatmul.f32.gmra.mxu0 %v539
      %v560 = vpop.f32.mrf.mxu0
      %v561 = vadd.f32 0.0, %v560
      %562 = vdwg.mxu0
      %v563 = vmul.f32 %v561, %v268
      %564 = vmatpush.msra.mxu0 0.0
      %565 = vmatpush.msra.mxu0 0.0
      %566 = vmatpush.msra.mxu0 0.0
      %567 = vmatpush.msra.mxu0 0.0
      %568 = vmatpush.msra.mxu0 0.0
      %569 = vmatpush.msra.mxu0 0.0
      %570 = vmatpush.msra.mxu0 0.0
      %571 = vmatpush.msra.mxu0 0.0
      %572 = vmatpush.msra.mxu0 0.0
      %573 = vmatpush.msra.mxu0 0.0
      %574 = vmatpush.msra.mxu0 0.0
      %575 = vmatpush.msra.mxu0 0.0
      %576 = vmatpush.msra.mxu0 0.0
      %577 = vmatpush.msra.mxu0 0.0
      %578 = vmatpush.msra.mxu0 %v532
      %579 = vmatpush.msra.mxu0 %v531
      %580 = vmatmul.f32.gmra.mxu0 %v539
      %v581 = vpop.f32.mrf.mxu0
      %v582 = vadd.f32 0.0, %v581
      %583 = vdwg.mxu0
      %585 = vrot.lane.b32.xlu0 %v273, 112
      %v586 = vpop.permute.xlu0 %585
      %v589 = vsel %vm277, %v563, 0
      %591 = vmatpush.msra.mxu0 0.0
      %592 = vmatpush.msra.mxu0 0.0
      %593 = vmatpush.msra.mxu0 0.0
      %594 = vmatpush.msra.mxu0 0.0
      %595 = vmatpush.msra.mxu0 0.0
      %596 = vmatpush.msra.mxu0 0.0
      %597 = vmatpush.msra.mxu0 0.0
      %598 = vmatpush.msra.mxu0 0.0
      %599 = vmatpush.msra.mxu0 0.0
      %600 = vmatpush.msra.mxu0 0.0
      %601 = vmatpush.msra.mxu0 0.0
      %602 = vmatpush.msra.mxu0 0.0
      %603 = vmatpush.msra.mxu0 0.0
      %604 = vmatpush.msra.mxu0 0.0
      %605 = vmatpush.msra.mxu0 0.0
      %606 = vmatpush.msra.mxu0 %v586
      %607 = vmatmul.f32.gmra.mxu0 %v589
      %v608 = vpop.f32.mrf.mxu0
      %v609 = vadd.f32 %v582, %v608
      %610 = vdwg.mxu0
      %v611 = vperm.slane %v507, 7
      %v612 = vsel %vm270, %v611, 0.0
      %v613 = vsel %vm271, %v611, 0.0
      %615 = vrot.lane.b32.xlu0 %v529, 112
      %v616 = vpop.permute.xlu0 %615
      %618 = vxpose.xlu0.b32.start [1/16] %v616, 128
      %619 = vxpose.xlu0.b32.cont [2/16] 0.0, 128
      %620 = vxpose.xlu0.b32.cont [3/16] 0.0, 128
      %621 = vxpose.xlu0.b32.cont [4/16] 0.0, 128
      %622 = vxpose.xlu0.b32.cont [5/16] 0.0, 128
      %623 = vxpose.xlu0.b32.cont [6/16] 0.0, 128
      %624 = vxpose.xlu0.b32.cont [7/16] 0.0, 128
      %625 = vxpose.xlu0.b32.cont [8/16] 0.0, 128
      %626 = vxpose.xlu0.b32.cont [9/16] 0.0, 128
      %627 = vxpose.xlu0.b32.cont [10/16] 0.0, 128
      %628 = vxpose.xlu0.b32.cont [11/16] 0.0, 128
      %629 = vxpose.xlu0.b32.cont [12/16] 0.0, 128
      %630 = vxpose.xlu0.b32.cont [13/16] 0.0, 128
      %631 = vxpose.xlu0.b32.cont [14/16] 0.0, 128
      %632 = vxpose.xlu0.b32.cont [15/16] 0.0, 128
      %633 = vxpose.xlu0.b32.end [16/16] 0.0, 128
      %v634 = vpop.trf.xlu0
      %v635 = vpop.trf.xlu0
      %v636 = vpop.trf.xlu0
      %v637 = vpop.trf.xlu0
      %v638 = vpop.trf.xlu0
      %v639 = vpop.trf.xlu0
      %v640 = vpop.trf.xlu0
      %v641 = vpop.trf.xlu0
      %v642 = vpop.trf.xlu0
      %v643 = vpop.trf.xlu0
      %v644 = vpop.trf.xlu0
      %v645 = vpop.trf.xlu0
      %v646 = vpop.trf.xlu0
      %v647 = vpop.trf.xlu0
      %v648 = vpop.trf.xlu0
      %v649 = vpop.trf.xlu0
      %v651 = vsel %vm277, %v634, 0
      %v654 = vsel %vm277, %v635, 0
      %656 = vmatpush.msra.mxu0 0.0
      %657 = vmatpush.msra.mxu0 0.0
      %658 = vmatpush.msra.mxu0 0.0
      %659 = vmatpush.msra.mxu0 0.0
      %660 = vmatpush.msra.mxu0 0.0
      %661 = vmatpush.msra.mxu0 0.0
      %662 = vmatpush.msra.mxu0 0.0
      %663 = vmatpush.msra.mxu0 0.0
      %664 = vmatpush.msra.mxu0 0.0
      %665 = vmatpush.msra.mxu0 0.0
      %666 = vmatpush.msra.mxu0 0.0
      %667 = vmatpush.msra.mxu0 0.0
      %668 = vmatpush.msra.mxu0 0.0
      %669 = vmatpush.msra.mxu0 0.0
      %670 = vmatpush.msra.mxu0 0.0
      %671 = vmatpush.msra.mxu0 %v586
      %672 = vmatmul.f32.gmra.mxu0 %v651
      %v673 = vpop.f32.mrf.mxu0
      %v674 = vadd.f32 0.0, %v673
      %675 = vmatmul.f32.gmra.mxu0 %v654
      %v676 = vpop.f32.mrf.mxu0
      %v677 = vadd.f32 0.0, %v676
      %678 = vdwg.mxu0
      %v680 = vsel %vm316, %v612, 0
      %v683 = vsel %vm316, %v613, 0
      %685 = vmatpush.msra.mxu0 0.0
      %686 = vmatpush.msra.mxu0 0.0
      %687 = vmatpush.msra.mxu0 0.0
      %688 = vmatpush.msra.mxu0 0.0
      %689 = vmatpush.msra.mxu0 0.0
      %690 = vmatpush.msra.mxu0 0.0
      %691 = vmatpush.msra.mxu0 0.0
      %692 = vmatpush.msra.mxu0 0.0
      %693 = vmatpush.msra.mxu0 0.0
      %694 = vmatpush.msra.mxu0 0.0
      %695 = vmatpush.msra.mxu0 0.0
      %696 = vmatpush.msra.mxu0 0.0
      %697 = vmatpush.msra.mxu0 0.0
      %698 = vmatpush.msra.mxu0 0.0
      %699 = vmatpush.msra.mxu0 %v532
      %700 = vmatpush.msra.mxu0 %v531
      %701 = vmatmul.f32.gmra.mxu0 %v680
      %v702 = vpop.f32.mrf.mxu0
      %v703 = vadd.f32 %v674, %v702
      %704 = vmatmul.f32.gmra.mxu0 %v683
      %v705 = vpop.f32.mrf.mxu0
      %v706 = vadd.f32 %v677, %v705
      %707 = vdwg.mxu0
      %708 = vst.msk [vmem:[%s530] sm:$0xff] %vm316, %v703
      %709 = vst.msk [vmem:[%s530 + $0x8] sm:$0xff] %vm316, %v706
      %711 = vrot.lane.b32.xlu0 %v609, 16
      %v712 = vpop.permute.xlu0 %711
      %v714 = vsel %vm316, %v385, %v712
      %vm715 = vcmask 261120
      %716 = vst.msk [vmem:[%s252] sm:$0xff] %vm715, %v714
      %p717 = scmp.lt.s32.totalorder %s18, 1
      %s718 = scalar_select %p717, %s18, 1
      %p719 = scmp.lt.s32.totalorder %s19, 0
      %s720 = scalar_select %p719, %s19, 0
      %s721 = sadd.s32 %s720, %s718
      %s722 = smul.addr %s721, 8
      %s723 = scalar_lea.vmem %s3, %s722
      // Predicated region
      $region37: #{metala_layer_forward.5} parent=31 // pred_check
        %p724 = pneg %p130
      $region38: #{metala_layer_forward.5} parent=31 // pred_check_branch
        %726 = sbr.rel (%p724) target = $region40
      $region39: #{metala_layer_forward.5} parent=31 // pred_region
        _
      $region40: #{metala_layer_forward.5} parent=31 // pred_fallthru
        _
    $region32: #{metala_layer_forward.5} parent=5 // pred_fallthru
      _
    %p727 = scmp.le.s32.totalorder 2, %s9
    // Predicated region
    $region41: #{metala_layer_forward.5} parent=5 // pred_check
      %p728 = pneg %p727
    $region42: #{metala_layer_forward.5} parent=5 // pred_check_branch
      %730 = sbr.rel (%p728) target = $region44
    $region43: #{metala_layer_forward.5} parent=5 // pred_region
      %s731 = ssub.s32 %s9, 2
      // Predicated region
      $region45: #{metala_layer_forward.5} parent=43 // pred_check
        %p732 = pneg %p136
      $region46: #{metala_layer_forward.5} parent=43 // pred_check_branch
        %734 = sbr.rel (%p732) target = $region48
      $region47: #{metala_layer_forward.5} parent=43 // pred_region
        %p735 = scmp.lt.s32.totalorder %s20, 1
        %s736 = scalar_select %p735, %s20, 1
        %p737 = scmp.lt.s32.totalorder %s21, 0
        %s738 = scalar_select %p737, %s21, 0
        %s739 = sadd.s32 %s738, %s736
        %s740 = smul.addr %s739, 8
        %s741 = scalar_lea.vmem %s3, %s740
      $region48: #{metala_layer_forward.5} parent=43 // pred_fallthru
        _
    $region44: #{metala_layer_forward.5} parent=5 // pred_fallthru
      _
  $region6: #{metala_layer_forward.5} parent=0 // loop_footer
    %s13 = sadd.s32 1, %s9
  $region7: #{metala_layer_forward.5} parent=0 // loop_footer_branch
    %8 = sbr.rel target = $region3
  $region8: #{metala_layer_forward.5} parent=0 // loop_exit
    _

// kernel: metala_layer_forward.7
$region0: #{metala_layer_forward.7}
  #allocation0 [shape = 'u32[]', space=smem, size = 0x4, offset = 0x4, fixed_abs, tag = 'smem constant byte address 0x4 - core index']
  #allocation1 [shape = 'u32[72,128]{1,0:T(1,128)}', space=vmem, size = 0x9000, scoped, tag = 'internal scratch']
  %s0 = inlined_call_operand.vmem [shape: f32[16,32], index: 0, kind: input, shape index: {}]
  %s1 = inlined_call_operand.vmem [shape: f32[1,32], index: 1, kind: input, shape index: {}]
  %s2 = inlined_call_operand.vmem [shape: bf16[32,128], index: 2, kind: input, shape index: {}]
  %s3 = inlined_call_operand.vmem [shape: bf16[64,32], index: 3, kind: input, shape index: {}]
  %s4 = inlined_call_operand.hbm [shape: f32[16,32], index: 4, kind: output, shape index: {}]
  %s5 = sld [smem:[#allocation0]]
  $region26: #{metala_layer_forward.7} parent=0
    _
  %s7 = ssub.s32 1, %s5
  %s8 = scalar_select 0, %s7, %s5
  $region1: #{metala_layer_forward.7} parent=0
    #allocation2 [shape = 'u8[8192]{0}', space=vmem, size = 0x2000, scoped, tag = 'output window, operand 0, single buffered']
    #allocation3 [shape = 's32[1]{0}', space=sflag, size = 0x4, scoped, tag = 'scoped memory for metala_layer_forward.7']
    %9 = vsyncpa [#allocation3], 0
    // Predicated region
    $region2: #{metala_layer_forward.7} parent=1 // pred_check
      _
    $region3: #{metala_layer_forward.7} parent=1 // pred_check_branch
      %11 = sbr.rel (0) target = $region5
    $region4: #{metala_layer_forward.7} parent=1 // pred_region
      _
    $region5: #{metala_layer_forward.7} parent=1 // pred_fallthru
      _
    // Predicated region
    $region6: #{metala_layer_forward.7} parent=1 // pred_check
      _
    $region7: #{metala_layer_forward.7} parent=1 // pred_check_branch
      %13 = sbr.rel (0) target = $region9
    $region8: #{metala_layer_forward.7} parent=1 // pred_region
      _
    $region9: #{metala_layer_forward.7} parent=1 // pred_fallthru
      _
    // Predicated region
    $region10: #{metala_layer_forward.7} parent=1 // pred_check
      _
    $region11: #{metala_layer_forward.7} parent=1 // pred_check_branch
      %15 = sbr.rel (0) target = $region13
    $region12: #{metala_layer_forward.7} parent=1 // pred_region
      _
    $region13: #{metala_layer_forward.7} parent=1 // pred_fallthru
      _
    // Predicated region
    $region14: #{metala_layer_forward.7} parent=1 // pred_check
      _
    $region15: #{metala_layer_forward.7} parent=1 // pred_check_branch
      %17 = sbr.rel (0) target = $region17
    $region16: #{metala_layer_forward.7} parent=1 // pred_region
      _
    $region17: #{metala_layer_forward.7} parent=1 // pred_fallthru
      _
    %v19 = vld [vmem:[%s0] sm:$0xff]
    %v20 = vld [vmem:[%s0 + $0x8] sm:$0xff]
    %v21 = vmul.f32 %v19, %v19
    %v22 = vmul.f32 %v20, %v20
    %vm23 = vcmask 261120
    %v24 = vsel %vm23, %v21, 0.0
    %25 = vadd.xlane.f32.xlu0 %v24
    %v26 = vpop.xlane.xlu0 %25
    %v27 = vsel %vm23, %v22, 0.0
    %28 = vadd.xlane.f32.xlu0 %v27
    %v29 = vpop.xlane.xlu0 %28
    %v30 = vrcp.pop 32.0
    %v31 = vmul.f32 32.0, %v30
    %v32 = vsub.f32 1.0, %v31
    %v33 = vmul.f32 %v30, %v32
    %v34 = vadd.f32 %v30, %v33
    %vm35 = vweird.f32 %v30
    %v36 = vsel %vm35, %v30, %v34
    %v37 = vmul.f32 %v26, %v36
    %v38 = vmul.f32 %v29, %v36
    %v39 = vadd.f32 %v37, 1e-06
    %v40 = vadd.f32 %v38, 1e-06
    %v41 = vrsqrt.pop %v39
    %v42 = vmul.f32 %v41, %v39
    %v43 = vmul.f32 %v42, %v41
    %v44 = vmul.f32 0.5, %v43
    %v45 = vsub.f32 1.5, %v44
    %v46 = vmul.f32 %v41, %v45
    %vm47 = vweird.f32 %v39
    %vm48 = vweird.f32 %v41
    %vm49 = vmor %vm47, %vm48
    %v50 = vsel %vm49, %v41, %v46
    %v51 = vrsqrt.pop %v40
    %v52 = vmul.f32 %v51, %v40
    %v53 = vmul.f32 %v52, %v51
    %v54 = vmul.f32 0.5, %v53
    %v55 = vsub.f32 1.5, %v54
    %v56 = vmul.f32 %v51, %v55
    %vm57 = vweird.f32 %v40
    %vm58 = vweird.f32 %v51
    %vm59 = vmor %vm57, %vm58
    %v60 = vsel %vm59, %v51, %v56
    %v61 = vmul.f32 %v19, %v50
    %v62 = vmul.f32 %v20, %v60
    %v63 = vld [vmem:[%s1] sm:$0x1]
    %v65 = vperm.slane %v63, 0
    %v67 = vmul.f32 %v61, %v65
    %v68 = vmul.f32 %v62, %v65
    %v69 = vpack.c.bf16 %v68, %v67
    %v70 = vld [vmem:[%s2] sm:$0xf]
    %v71 = vld [vmem:[%s2 + $0x4] sm:$0xf]
    %v72 = vld [vmem:[%s2 + $0x8] sm:$0xf]
    %v73 = vld [vmem:[%s2 + $0xc] sm:$0xf]
    %v78 = vunpack.c.l.b16 %v70
    %v79 = vunpack.c.l.b16 %v71
    %v80 = vunpack.c.l.b16 %v72
    %v81 = vunpack.c.l.b16 %v73
    %v82 = vpack.c.b16 %v79, %v78
    %v83 = vpack.c.b16 %v81, %v80
    %v87 = vsel %vm23, %v69, 0
    %89 = vmatpush.bf16.msra.mxu0 0
    %90 = vmatpush.bf16.msra.mxu0 0
    %91 = vmatpush.bf16.msra.mxu0 0
    %92 = vmatpush.bf16.msra.mxu0 0
    %93 = vmatpush.bf16.msra.mxu0 0
    %94 = vmatpush.bf16.msra.mxu0 0
    %95 = vmatpush.bf16.msra.mxu0 %v83
    %96 = vmatpush.bf16.msra.mxu0 %v82
    %97 = vmatmul.bf16.gmra.mxu0 %v87
    %v98 = vpop.f32.mrf.mxu0
    %v99 = vadd.f32 0.0, %v98
    %v100 = vpop.f32.mrf.mxu0
    %v101 = vadd.f32 0.0, %v100
    %102 = vdwg.mxu0
    %v103 = vxor.u32 %v99, 2147483648
    %v104 = vxor.u32 %v101, 2147483648
    %v105 = vmul.f32 %v103, 1.442695
    %v106 = vpow.pop %v105
    %v107 = vmul.f32 %v104, 1.442695
    %v108 = vpow.pop %v107
    %v109 = vadd.f32 %v106, 1.0
    %v110 = vadd.f32 %v108, 1.0
    %v111 = vrcp.pop %v109
    %v112 = vmul.f32 %v109, %v111
    %v113 = vsub.f32 1.0, %v112
    %v114 = vmul.f32 %v111, %v113
    %v115 = vadd.f32 %v111, %v114
    %vm116 = vweird.f32 %v109
    %vm117 = vweird.f32 %v111
    %vm118 = vmor %vm116, %vm117
    %v119 = vsel %vm118, %v111, %v115
    %v120 = vand.u32 2147483647, %v109
    %vm121 = vcmp.eq.f32.partialorder %v120, 8.507059e+37
    %v122 = vand.u32 %v109, 2147483648
    %v123 = vor.u32 1.1754944e-38, %v122
    %v124 = vsel %vm121, %v123, %v119
    %v125 = vmul.f32 1.0, %v124
    %v126 = vrcp.pop %v110
    %v127 = vmul.f32 %v110, %v126
    %v128 = vsub.f32 1.0, %v127
    %v129 = vmul.f32 %v126, %v128
    %v130 = vadd.f32 %v126, %v129
    %vm131 = vweird.f32 %v110
    %vm132 = vweird.f32 %v126
    %vm133 = vmor %vm131, %vm132
    %v134 = vsel %vm133, %v126, %v130
    %v135 = vand.u32 2147483647, %v110
    %vm136 = vcmp.eq.f32.partialorder %v135, 8.507059e+37
    %v137 = vand.u32 %v110, 2147483648
    %v138 = vor.u32 1.1754944e-38, %v137
    %v139 = vsel %vm136, %v138, %v134
    %v140 = vmul.f32 1.0, %v139
    %v141 = vmul.f32 %v99, %v125
    %v142 = vmul.f32 %v101, %v140
    %145 = vrot.lane.b32.xlu0 %v99, 64
    %v146 = vpop.permute.xlu0 %145
    %147 = vrot.lane.b32.xlu0 %v101, 64
    %v148 = vpop.permute.xlu0 %147
    %v151 = vmul.f32 %v141, %v146
    %v152 = vmul.f32 %v142, %v148
    %v153 = vpack.c.bf16 %v152, %v151
    %v154 = vld [vmem:[%s3] sm:$0xf]
    %v155 = vld [vmem:[%s3 + $0x4] sm:$0xf]
    %v156 = vld [vmem:[%s3 + $0x8] sm:$0xf]
    %v157 = vld [vmem:[%s3 + $0xc] sm:$0xf]
    %v158 = vld [vmem:[%s3 + $0x10] sm:$0xf]
    %v159 = vld [vmem:[%s3 + $0x14] sm:$0xf]
    %v160 = vld [vmem:[%s3 + $0x18] sm:$0xf]
    %v161 = vld [vmem:[%s3 + $0x1c] sm:$0xf]
    %v170 = vunpack.c.l.b16 %v154
    %v171 = vunpack.c.l.b16 %v155
    %v172 = vunpack.c.l.b16 %v156
    %v173 = vunpack.c.l.b16 %v157
    %v174 = vunpack.c.l.b16 %v158
    %v175 = vunpack.c.l.b16 %v159
    %v176 = vunpack.c.l.b16 %v160
    %v177 = vunpack.c.l.b16 %v161
    %v178 = vpack.c.b16 %v171, %v170
    %v179 = vpack.c.b16 %v173, %v172
    %v180 = vpack.c.b16 %v175, %v174
    %v181 = vpack.c.b16 %v177, %v176
    %vm186 = vcmask 523264
    %v188 = vsel %vm186, %v153, 0
    %190 = vmatpush.bf16.msra.mxu0 0
    %191 = vmatpush.bf16.msra.mxu0 0
    %192 = vmatpush.bf16.msra.mxu0 0
    %193 = vmatpush.bf16.msra.mxu0 0
    %194 = vmatpush.bf16.msra.mxu0 %v181
    %195 = vmatpush.bf16.msra.mxu0 %v180
    %196 = vmatpush.bf16.msra.mxu0 %v179
    %197 = vmatpush.bf16.msra.mxu0 %v178
    %198 = vmatmul.bf16.gmra.mxu0 %v188
    %v199 = vpop.f32.mrf.mxu0
    %v200 = vadd.f32 %v19, %v199
    %v201 = vpop.f32.mrf.mxu0
    %v202 = vadd.f32 %v20, %v201
    %203 = vdwg.mxu0
    %204 = vst.msk [vmem:[#allocation2] sm:$0xff] %vm23, %v200
    %205 = vst.msk [vmem:[#allocation2 + $0x8] sm:$0xff] %vm23, %v202
    // Predicated region
    $region18: #{metala_layer_forward.7} parent=1 // pred_check
      _
    $region19: #{metala_layer_forward.7} parent=1 // pred_check_branch
      %207 = sbr.rel (0) target = $region21
    $region20: #{metala_layer_forward.7} parent=1 // pred_region
      %209 = vsyncadd [#allocation3], 0
      %s210 = sshll.u32 [#allocation2], 4
      %s211 = int_to_ptr.vmem [resolvable:$true] %s210
      %s212 = sshll.u32 %s4, 4
      %s213 = int_to_ptr.hbm [resolvable:$true] %s212
      %218 = dma.vmem_to_hbm [thread:$0]  %s211, 256, %s213, [#allocation3], 128, 128, 8
    $region21: #{metala_layer_forward.7} parent=1 // pred_fallthru
      _
    // Predicated region
    $region22: #{metala_layer_forward.7} parent=1 // pred_check
      _
    $region23: #{metala_layer_forward.7} parent=1 // pred_check_branch
      %220 = sbr.rel (0) target = $region25
    $region24: #{metala_layer_forward.7} parent=1 // pred_region
      %222 = dma.done [#allocation3], 256
    $region25: #{metala_layer_forward.7} parent=1 // pred_fallthru
      _
    %223 = vsyncpa [#allocation3], 1

</llo_original>
